<compile_context>
chip_gen: v7x
topology: tpu7x:2x2x1
jax: 0.10.0
libtpu: 0.0.40
codegen_flags: <defaults>
</compile_context>

<pallas_src>
import jax
import jax.numpy as jnp
from jax import lax
from jax.experimental import pallas as pl
from jax.experimental.pallas import tpu as pltpu

INPUT_DIM = 32       # input feature dim
EMBED_DIM = 32       # output feature dim
HIDDEN = 32          # fc_Q/K/V width and FFN hidden width (hardcoded 32 in module)
NUM_HEAD = 4         # module's mask path hardcodes 4 heads
HEAD_DIM = HIDDEN // NUM_HEAD
EPS = 1e-5           # torch.nn.LayerNorm default eps
FLAT_IO_MAX_L = 32   # use lane-dense flattened I/O slabs when L is small

# Rows of the packed (9, 32) bias / LayerNorm-parameter slab.
_G1, _BE1, _BQ, _BK, _BC, _G2, _BE2, _B1, _B2 = range(9)


def _layernorm(x, gamma, beta):
    mu = jnp.mean(x, axis=-1, keepdims=True)
    xc = x - mu
    var = jnp.mean(xc * xc, axis=-1, keepdims=True)
    return xc * lax.rsqrt(var + EPS) * gamma + beta


def _leaky_relu(x, slope=0.2):
    return jnp.where(x >= 0, x, slope * x)


def _unflatten_rows(flat, L, D):
    """(BB, L*D) -> (BB, L, D) via lane slices + sublane stack (Mosaic-safe)."""
    return jnp.stack([flat[:, l * D:(l + 1) * D] for l in range(L)], axis=1)


def _flatten_rows(x3):
    """(BB, L, D) -> (BB, L*D) via middle-index slices + lane concat (Mosaic-safe)."""
    L = x3.shape[1]
    return jnp.concatenate([x3[:, l, :] for l in range(L)], axis=-1)


def _make_kernel(with_mask, flat_io, L, compute_dtype):
    """Kernel factory; mask-free variant has no mask ref at all."""
    cdt = compute_dtype

    def kernel(*refs):
        if with_mask:
            mask_ref, x_ref, wqkvo_ref, wstack_ref, vecs_ref, out_ref = refs
        else:
            x_ref, wqkvo_ref, wstack_ref, vecs_ref, out_ref = refs

        xr = x_ref[...]
        if flat_io:
            BB = xr.shape[0]
            x3 = _unflatten_rows(xr, L, INPUT_DIM)               # (BB, L, Din)
        else:
            x3 = xr
            BB = x3.shape[0]
        M = BB * L
        x2 = x3.reshape(M, INPUT_DIM).astype(jnp.float32)        # leading collapse (free)

        vecs = vecs_ref[...]                                     # (9, 32) f32
        w1 = wstack_ref[0]                                       # (EMBED_DIM, HIDDEN)
        w2 = wstack_ref[1]                                       # (HIDDEN, EMBED_DIM)

        # ---------------- MultiHead ----------------
        xn = _layernorm(x2, vecs[_G1:_G1 + 1], vecs[_BE1:_BE1 + 1])

        # Fused Q | K | (per-head V @ Wo) projection: one (M,32)x(32,192) MXU matmul.
        qkvo = jnp.dot(xn.astype(cdt), wqkvo_ref[...],
                       preferred_element_type=jnp.float32)       # (M, 192)
        q = qkvo[:, :HIDDEN] + vecs[_BQ:_BQ + 1]
        k = qkvo[:, HIDDEN:2 * HIDDEN] + vecs[_BK:_BK + 1]
        vo = qkvo[:, 2 * HIDDEN:]                                # (M, NUM_HEAD*EMBED_DIM)

        if with_mask:
            mr = mask_ref[...]
            if flat_io:
                mask = jnp.abs(_unflatten_rows(mr, L, L).astype(jnp.float32))
            else:
                mask = jnp.abs(mr.astype(jnp.float32))           # (BB, L, L)

        scale = 1.0 / (HEAD_DIM ** 0.5)
        # Per-head scores (batched over BB); stacked along the leading dim so the
        # softmax (max / exp / sum / div) runs once over all heads.
        s_parts = []
        for h in range(NUM_HEAD):
            lo, hi = h * HEAD_DIM, (h + 1) * HEAD_DIM
            qh = q[:, lo:hi].reshape(BB, L, HEAD_DIM).astype(cdt)
            kh = k[:, lo:hi].reshape(BB, L, HEAD_DIM).astype(cdt)
            s_h = jnp.einsum("bld,bmd->blm", qh, kh,
                             preferred_element_type=jnp.float32) * scale
            if with_mask:
                s_h = s_h * mask            # multiplicative |mask|, as in the reference
            s_parts.append(s_h)
        s = jnp.concatenate(s_parts, axis=0)                     # (H*BB, L, L)
        s = s - jnp.max(s, axis=-1, keepdims=True)               # stable softmax
        p = jnp.exp(s)
        p = p / jnp.sum(p, axis=-1, keepdims=True)
        # dropout(p=0.1): inference mode -> identity

        # mh = b_const + sum_h p_h @ (xn @ wvo_h)   (out-projection already folded in)
        mh = jnp.broadcast_to(vecs[_BC:_BC + 1], (M, EMBED_DIM)).astype(jnp.float32)
        for h in range(NUM_HEAD):
            lo, hi = h * EMBED_DIM, (h + 1) * EMBED_DIM
            p_h = p[h * BB:(h + 1) * BB].astype(cdt)             # (BB, L, L)
            vo_h = vo[:, lo:hi].reshape(BB, L, EMBED_DIM).astype(cdt)
            att_h = jnp.einsum("blm,bmd->bld", p_h, vo_h,
                               preferred_element_type=jnp.float32)
            mh = mh + att_h.reshape(M, EMBED_DIM)

        # ------------- FullyConnectedOutput -------------
        yn = _layernorm(mh, vecs[_G2:_G2 + 1], vecs[_BE2:_BE2 + 1])
        h1 = _leaky_relu(jnp.dot(yn.astype(cdt), w1,
                                 preferred_element_type=jnp.float32) + vecs[_B1:_B1 + 1])
        out = _leaky_relu(jnp.dot(h1.astype(cdt), w2,
                                  preferred_element_type=jnp.float32) + vecs[_B2:_B2 + 1])

        if flat_io:
            # Lane-dense (BB, L*EMBED_DIM) slab -> unmasked vector stores / dense DMA.
            out_ref[...] = _flatten_rows(out.reshape(BB, L, EMBED_DIM)).astype(out_ref.dtype)
        else:
            out_ref[...] = out.reshape(BB, L, EMBED_DIM).astype(out_ref.dtype)

    return kernel


def _pick_block_b(B, L, target_rows, with_mask):
    """Largest batch block with bb*L ~ target_rows, bounded VMEM, >=2 grid steps."""
    bb = max(1, min(B, max(1, target_rows // max(L, 1))))
    # Rough per-batch-element f32 working set of the big in-kernel tensors; keep a
    # step around ~6 MiB so default scoped VMEM (16 MiB v5e / 32 MiB v6e,v7x) has
    # headroom for double-buffered blocks and temporaries.
    per_b = 4 * L * (INPUT_DIM + 6 * HIDDEN + 2 * EMBED_DIM + 2 * (NUM_HEAD + 1) * L)
    if with_mask:
        per_b += 4 * L * L
    bb = max(1, min(bb, (6 * 1024 * 1024) // max(per_b, 1)))
    if B >= 2:                       # v7x has 2 TensorCores: keep at least 2 grid steps
        bb = max(1, min(bb, B // 2))
    while B % bb:
        bb -= 1
    return bb


def pack_params(params, compute_dtype=jnp.float32):
    """Pack weights into MXU-friendly slabs; fold Wo into the V projection."""
    wq, wk, wv, wo = params["wq"], params["wk"], params["wv"], params["wo"]
    # wvo_h = wv[:, h] @ wo[h, :]; exact fold because softmax rows sum to 1.
    wvo = jnp.concatenate(
        [wv[:, h * HEAD_DIM:(h + 1) * HEAD_DIM] @ wo[h * HEAD_DIM:(h + 1) * HEAD_DIM, :]
         for h in range(NUM_HEAD)], axis=1)                              # (32, 128)
    b_const = params["bo"] + sum(
        params["bv"][:, h * HEAD_DIM:(h + 1) * HEAD_DIM]
        @ wo[h * HEAD_DIM:(h + 1) * HEAD_DIM, :] for h in range(NUM_HEAD))
    wqkvo = jnp.concatenate([wq, wk, wvo], axis=1)                       # (32, 192)
    wstack = jnp.stack([params["w1"], params["w2"]], axis=0)            # (2, 32, 32)
    vecs = jnp.concatenate(
        [params["g1"], params["be1"], params["bq"], params["bk"], b_const,
         params["g2"], params["be2"], params["b1"], params["b2"]],
        axis=0).astype(jnp.float32)                                      # (9, 32)
    return wqkvo.astype(compute_dtype), wstack.astype(compute_dtype), vecs


def encoder_layer(x, params, mask=None, *, block_b=None, target_rows=1024,
                  compute_dtype=jnp.float32, flatten_io=None):
    """x: (B, L, INPUT_DIM) -> (B, L, EMBED_DIM).

    compute_dtype=jnp.bfloat16: bf16 HBM streams + bf16 MXU inputs with f32
    accumulation (recommended on v6e/v7x).  Keep the f32 default on v5e.
    """
    B, L, Din = x.shape
    assert Din == INPUT_DIM
    with_mask = mask is not None
    bb = block_b if block_b is not None else _pick_block_b(B, L, target_rows, with_mask)
    assert B % bb == 0
    nb = B // bb
    out_dtype = x.dtype
    if flatten_io is None:
        flatten_io = L <= FLAT_IO_MAX_L

    wqkvo, wstack, vecs = pack_params(params, compute_dtype)
    if compute_dtype != jnp.float32:
        x = x.astype(compute_dtype)          # halve the activation HBM stream

    kernel = _make_kernel(with_mask, flatten_io, L, compute_dtype)

    def full(shape):
        return pl.BlockSpec(shape, lambda b: (0,) * len(shape))

    in_specs, inputs = [], []
    if with_mask:
        if flatten_io:
            inputs.append(mask.reshape(nb, bb, L * L))           # free reshape, orig dtype
            in_specs.append(pl.BlockSpec((None, bb, L * L), lambda b: (b, 0, 0)))
        else:
            inputs.append(mask)
            in_specs.append(pl.BlockSpec((bb, L, L), lambda b: (b, 0, 0)))

    if flatten_io:
        x_in = x.reshape(nb, bb, L * INPUT_DIM)                  # free reshape
        in_specs.append(pl.BlockSpec((None, bb, L * INPUT_DIM), lambda b: (b, 0, 0)))
        out_shape = jax.ShapeDtypeStruct((nb, bb, L * EMBED_DIM), out_dtype)
        out_spec = pl.BlockSpec((None, bb, L * EMBED_DIM), lambda b: (b, 0, 0))
    else:
        x_in = x
        in_specs.append(pl.BlockSpec((bb, L, INPUT_DIM), lambda b: (b, 0, 0)))
        out_shape = jax.ShapeDtypeStruct((B, L, EMBED_DIM), out_dtype)
        out_spec = pl.BlockSpec((bb, L, EMBED_DIM), lambda b: (b, 0, 0))

    in_specs += [full(wqkvo.shape), full(wstack.shape), full(vecs.shape)]
    inputs += [x_in, wqkvo, wstack, vecs]

    out = pl.pallas_call(
        kernel,
        out_shape=out_shape,
        grid=(nb,),
        in_specs=in_specs,
        out_specs=out_spec,
        compiler_params=pltpu.CompilerParams(dimension_semantics=("parallel",)),
    )(*inputs)
    return out.reshape(B, L, EMBED_DIM)      # free reshape outside the kernel


def init_params(key):
    ks = jax.random.split(key, 14)

    def mat(k, fi, fo):
        return jax.random.normal(k, (fi, fo), jnp.float32) / jnp.sqrt(float(fi))

    def vec(k, d, scale=0.05):
        return scale * jax.random.normal(k, (1, d), jnp.float32)

    return {
        "g1": jnp.ones((1, INPUT_DIM), jnp.float32),
        "be1": vec(ks[0], INPUT_DIM),
        "wq": mat(ks[1], INPUT_DIM, HIDDEN), "bq": vec(ks[2], HIDDEN),
        "wk": mat(ks[3], INPUT_DIM, HIDDEN), "bk": vec(ks[4], HIDDEN),
        "wv": mat(ks[5], INPUT_DIM, HIDDEN), "bv": vec(ks[6], HIDDEN),
        "wo": mat(ks[7], HIDDEN, EMBED_DIM), "bo": vec(ks[8], EMBED_DIM),
        "g2": jnp.ones((1, EMBED_DIM), jnp.float32),
        "be2": vec(ks[9], EMBED_DIM),
        "w1": mat(ks[10], EMBED_DIM, HIDDEN), "b1": vec(ks[11], HIDDEN),
        "w2": mat(ks[12], HIDDEN, EMBED_DIM), "b2": vec(ks[13], EMBED_DIM),
    }


def reference_encoder_layer(x, p, mask=None):
    """Pure-JAX reference mirroring the PyTorch forward (eval mode)."""
    B, L, _ = x.shape

    def ln(a, g, b):
        mu = a.mean(-1, keepdims=True)
        var = ((a - mu) ** 2).mean(-1, keepdims=True)
        return (a - mu) / jnp.sqrt(var + EPS) * g + b

    xn = ln(x, p["g1"], p["be1"])
    q = xn @ p["wq"] + p["bq"]
    k = xn @ p["wk"] + p["bk"]
    v = xn @ p["wv"] + p["bv"]
    hd = HIDDEN // NUM_HEAD
    qh = q.reshape(B, L, NUM_HEAD, hd).transpose(0, 2, 1, 3)
    kh = k.reshape(B, L, NUM_HEAD, hd).transpose(0, 2, 1, 3)
    vh = v.reshape(B, L, NUM_HEAD, hd).transpose(0, 2, 1, 3)
    s = jnp.einsum("bhld,bhmd->bhlm", qh, kh) / (hd ** 0.5)
    if mask is not None:
        s = s * jnp.abs(mask)[:, None]
    s = jax.nn.softmax(s, axis=-1)
    att = jnp.einsum("bhlm,bhmd->bhld", s, vh).transpose(0, 2, 1, 3).reshape(B, L, HIDDEN)
    mh = att @ p["wo"] + p["bo"]
    yn = ln(mh, p["g2"], p["be2"])
    pre1 = yn @ p["w1"] + p["b1"]
    h1 = jnp.where(pre1 >= 0, pre1, 0.2 * pre1)
    pre2 = h1 @ p["w2"] + p["b2"]
    return jnp.where(pre2 >= 0, pre2, 0.2 * pre2)


if __name__ == "__main__":
    key = jax.random.PRNGKey(0)
    kx, kp, km = jax.random.split(key, 3)
    B, L = 2, 8
    x = jax.random.normal(kx, (B, L, INPUT_DIM), jnp.float32)
    params = init_params(kp)
    ref = reference_encoder_layer(x, params)

    # 1) mask=None fast path, lane-dense flat I/O
    out = jax.block_until_ready(encoder_layer(x, params))
    assert out.shape == (B, L, EMBED_DIM)
    assert jnp.allclose(out, ref, atol=1e-4, rtol=1e-4), \
        f"no-mask max abs err {float(jnp.max(jnp.abs(out - ref)))}"

    # 2) explicit-mask path (mask DMA'd raw; abs() in-kernel)
    mask = jax.random.normal(km, (B, L, L), jnp.float32)
    ref_m = reference_encoder_layer(x, params, mask)
    out_m = jax.block_until_ready(encoder_layer(x, params, mask))
    assert jnp.allclose(out_m, ref_m, atol=1e-4, rtol=1e-4), \
        f"mask max abs err {float(jnp.max(jnp.abs(out_m - ref_m)))}"

    # 3) non-flattened fallback path (used automatically when L > FLAT_IO_MAX_L)
    out_nf = jax.block_until_ready(encoder_layer(x, params, mask, flatten_io=False))
    assert jnp.allclose(out_nf, ref_m, atol=1e-4, rtol=1e-4), \
        f"non-flat max abs err {float(jnp.max(jnp.abs(out_nf - ref_m)))}"

    # 4) bf16 HBM/MXU variant (v6e/v7x): bf16 inputs+weights, f32 accumulate/elementwise
    out_bf16 = jax.block_until_ready(
        encoder_layer(x, params, compute_dtype=jnp.bfloat16))
    assert jnp.allclose(out_bf16, ref, atol=1e-1, rtol=1e-1), \
        f"bf16 max abs err {float(jnp.max(jnp.abs(out_bf16 - ref)))}"

    print("KERNEL_OK")
</pallas_src>

<mosaic_0001>
module attributes {stable_mosaic.version = 11 : i64} {
  func.func @kernel(%arg0: i32, %arg1: memref<1x1x256xf32, #tpu.memory_space<vmem>>, %arg2: memref<32x192xf32, #tpu.memory_space<vmem>>, %arg3: memref<2x32x32xf32, #tpu.memory_space<vmem>>, %arg4: memref<9x32xf32, #tpu.memory_space<vmem>>, %arg5: memref<1x1x256xf32, #tpu.memory_space<vmem>>) attributes {dimension_semantics = [#tpu.dimension_semantics<parallel>], iteration_bounds = array<i64: 2>, scalar_prefetch = 0 : i64, scratch_operands = 0 : i64, tpu.core_type = #tpu.core_type<tc>, window_params = [{transform_indices = @transform_0, window_bounds = array<i64: 1, 1, 256>}, {pipeline_mode = #tpu.pipeline_mode<synchronous>, transform_indices = @transform_1, window_bounds = array<i64: 32, 192>}, {pipeline_mode = #tpu.pipeline_mode<synchronous>, transform_indices = @transform_2, window_bounds = array<i64: 2, 32, 32>}, {pipeline_mode = #tpu.pipeline_mode<synchronous>, transform_indices = @transform_3, window_bounds = array<i64: 9, 32>}, {transform_indices = @transform_4, window_bounds = array<i64: 1, 1, 256>}]} {
    %c0 = arith.constant 0 : index
    %c0_0 = arith.constant 0 : index
    %c0_1 = arith.constant 0 : index
    %0 = vector.load %arg1[%c0, %c0_0, %c0_1] : memref<1x1x256xf32, #tpu.memory_space<vmem>>, vector<1x1x256xf32>
    %1 = vector.shape_cast %0 : vector<1x1x256xf32> to vector<1x256xf32>
    %2 = vector.extract_strided_slice %1 {offsets = [0, 0], sizes = [1, 32], strides = [1, 1]} : vector<1x256xf32> to vector<1x32xf32>
    %3 = vector.extract_strided_slice %1 {offsets = [0, 32], sizes = [1, 32], strides = [1, 1]} : vector<1x256xf32> to vector<1x32xf32>
    %4 = vector.extract_strided_slice %1 {offsets = [0, 64], sizes = [1, 32], strides = [1, 1]} : vector<1x256xf32> to vector<1x32xf32>
    %5 = vector.extract_strided_slice %1 {offsets = [0, 96], sizes = [1, 32], strides = [1, 1]} : vector<1x256xf32> to vector<1x32xf32>
    %6 = vector.extract_strided_slice %1 {offsets = [0, 128], sizes = [1, 32], strides = [1, 1]} : vector<1x256xf32> to vector<1x32xf32>
    %7 = vector.extract_strided_slice %1 {offsets = [0, 160], sizes = [1, 32], strides = [1, 1]} : vector<1x256xf32> to vector<1x32xf32>
    %8 = vector.extract_strided_slice %1 {offsets = [0, 192], sizes = [1, 32], strides = [1, 1]} : vector<1x256xf32> to vector<1x32xf32>
    %9 = vector.extract_strided_slice %1 {offsets = [0, 224], sizes = [1, 32], strides = [1, 1]} : vector<1x256xf32> to vector<1x32xf32>
    %10 = vector.shape_cast %2 : vector<1x32xf32> to vector<1x1x32xf32>
    %11 = vector.shape_cast %3 : vector<1x32xf32> to vector<1x1x32xf32>
    %12 = vector.shape_cast %4 : vector<1x32xf32> to vector<1x1x32xf32>
    %13 = vector.shape_cast %5 : vector<1x32xf32> to vector<1x1x32xf32>
    %14 = vector.shape_cast %6 : vector<1x32xf32> to vector<1x1x32xf32>
    %15 = vector.shape_cast %7 : vector<1x32xf32> to vector<1x1x32xf32>
    %16 = vector.shape_cast %8 : vector<1x32xf32> to vector<1x1x32xf32>
    %17 = vector.shape_cast %9 : vector<1x32xf32> to vector<1x1x32xf32>
    %18 = tpu.concatenate %10, %11, %12, %13, %14, %15, %16, %17 in 1 : vector<1x1x32xf32>, vector<1x1x32xf32>, vector<1x1x32xf32>, vector<1x1x32xf32>, vector<1x1x32xf32>, vector<1x1x32xf32>, vector<1x1x32xf32>, vector<1x1x32xf32> -> vector<1x8x32xf32>
    %19 = vector.shape_cast %18 : vector<1x8x32xf32> to vector<8x32xf32>
    %c0_2 = arith.constant 0 : index
    %c0_3 = arith.constant 0 : index
    %20 = vector.load %arg4[%c0_2, %c0_3] : memref<9x32xf32, #tpu.memory_space<vmem>>, vector<9x32xf32>
    %c0_4 = arith.constant 0 : index
    %c0_5 = arith.constant 0 : index
    %c0_6 = arith.constant 0 : index
    %21 = vector.load %arg3[%c0_4, %c0_5, %c0_6] : memref<2x32x32xf32, #tpu.memory_space<vmem>>, vector<1x32x32xf32>
    %22 = vector.shape_cast %21 : vector<1x32x32xf32> to vector<32x32xf32>
    %c1 = arith.constant 1 : index
    %c0_7 = arith.constant 0 : index
    %c0_8 = arith.constant 0 : index
    %23 = vector.load %arg3[%c1, %c0_7, %c0_8] : memref<2x32x32xf32, #tpu.memory_space<vmem>>, vector<1x32x32xf32>
    %24 = vector.shape_cast %23 : vector<1x32x32xf32> to vector<32x32xf32>
    %25 = vector.extract_strided_slice %20 {offsets = [0, 0], sizes = [1, 32], strides = [1, 1]} : vector<9x32xf32> to vector<1x32xf32>
    %26 = vector.extract_strided_slice %20 {offsets = [1, 0], sizes = [1, 32], strides = [1, 1]} : vector<9x32xf32> to vector<1x32xf32>
    %cst = arith.constant dense<0.000000e+00> : vector<8xf32>
    %27 = vector.multi_reduction <add>, %19, %cst [1] : vector<8x32xf32> to vector<8xf32>
    %28 = vector.shape_cast %27 : vector<8xf32> to vector<8x1xf32>
    %cst_9 = arith.constant 3.200000e+01 : f32
    %29 = vector.broadcast %cst_9 : f32 to vector<8x1xf32>
    %30 = arith.divf %28, %29 : vector<8x1xf32>
    %31 = vector.broadcast %30 : vector<8x1xf32> to vector<8x32xf32>
    %32 = arith.subf %19, %31 : vector<8x32xf32>
    %33 = arith.mulf %32, %32 : vector<8x32xf32>
    %cst_10 = arith.constant dense<0.000000e+00> : vector<8xf32>
    %34 = vector.multi_reduction <add>, %33, %cst_10 [1] : vector<8x32xf32> to vector<8xf32>
    %35 = vector.shape_cast %34 : vector<8xf32> to vector<8x1xf32>
    %cst_11 = arith.constant 3.200000e+01 : f32
    %36 = vector.broadcast %cst_11 : f32 to vector<8x1xf32>
    %37 = arith.divf %35, %36 : vector<8x1xf32>
    %cst_12 = arith.constant 9.99999974E-6 : f32
    %38 = vector.broadcast %cst_12 : f32 to vector<8x1xf32>
    %39 = arith.addf %37, %38 : vector<8x1xf32>
    %40 = math.rsqrt %39 : vector<8x1xf32>
    %41 = vector.broadcast %40 : vector<8x1xf32> to vector<8x32xf32>
    %42 = arith.mulf %32, %41 : vector<8x32xf32>
    %43 = vector.broadcast %25 : vector<1x32xf32> to vector<8x32xf32>
    %44 = arith.mulf %42, %43 : vector<8x32xf32>
    %45 = vector.broadcast %26 : vector<1x32xf32> to vector<8x32xf32>
    %46 = arith.addf %44, %45 : vector<8x32xf32>
    %c0_13 = arith.constant 0 : index
    %c0_14 = arith.constant 0 : index
    %47 = vector.load %arg2[%c0_13, %c0_14] : memref<32x192xf32, #tpu.memory_space<vmem>>, vector<32x192xf32>
    %cst_15 = arith.constant dense<0.000000e+00> : vector<8x192xf32>
    %48 = tpu.matmul %46, %47, %cst_15 {dimension_numbers = #tpu.dot_dimension_numbers<[1], [0], [0], [1], [0, 0, 1, 1], [], []>} : vector<8x32xf32>, vector<32x192xf32>, vector<8x192xf32> -> vector<8x192xf32>
    %49 = vector.extract_strided_slice %48 {offsets = [0, 0], sizes = [8, 32], strides = [1, 1]} : vector<8x192xf32> to vector<8x32xf32>
    %50 = vector.extract_strided_slice %20 {offsets = [2, 0], sizes = [1, 32], strides = [1, 1]} : vector<9x32xf32> to vector<1x32xf32>
    %51 = vector.broadcast %50 : vector<1x32xf32> to vector<8x32xf32>
    %52 = arith.addf %49, %51 : vector<8x32xf32>
    %53 = vector.extract_strided_slice %48 {offsets = [0, 32], sizes = [8, 32], strides = [1, 1]} : vector<8x192xf32> to vector<8x32xf32>
    %54 = vector.extract_strided_slice %20 {offsets = [3, 0], sizes = [1, 32], strides = [1, 1]} : vector<9x32xf32> to vector<1x32xf32>
    %55 = vector.broadcast %54 : vector<1x32xf32> to vector<8x32xf32>
    %56 = arith.addf %53, %55 : vector<8x32xf32>
    %57 = vector.extract_strided_slice %48 {offsets = [0, 64], sizes = [8, 128], strides = [1, 1]} : vector<8x192xf32> to vector<8x128xf32>
    %58 = vector.extract_strided_slice %52 {offsets = [0, 0], sizes = [8, 8], strides = [1, 1]} : vector<8x32xf32> to vector<8x8xf32>
    %59 = vector.shape_cast %58 : vector<8x8xf32> to vector<1x8x8xf32>
    %60 = vector.extract_strided_slice %56 {offsets = [0, 0], sizes = [8, 8], strides = [1, 1]} : vector<8x32xf32> to vector<8x8xf32>
    %61 = vector.shape_cast %60 : vector<8x8xf32> to vector<1x8x8xf32>
    "tpu.trace_start"() <{level = 10 : i32, message = "bld,bmd->blm"}> : () -> ()
    %cst_16 = arith.constant dense<0.000000e+00> : vector<1x8x8xf32>
    %62 = tpu.matmul %59, %61, %cst_16 {dimension_numbers = #tpu.dot_dimension_numbers<[2], [2], [1], [1], [0, 0, 0, 1, 1, 1], [0], [0]>} : vector<1x8x8xf32>, vector<1x8x8xf32>, vector<1x8x8xf32> -> vector<1x8x8xf32>
    "tpu.trace_stop"() : () -> ()
    %cst_17 = arith.constant 0.353553385 : f32
    %63 = vector.broadcast %cst_17 : f32 to vector<1x8x8xf32>
    %64 = arith.mulf %62, %63 : vector<1x8x8xf32>
    %65 = vector.extract_strided_slice %52 {offsets = [0, 8], sizes = [8, 8], strides = [1, 1]} : vector<8x32xf32> to vector<8x8xf32>
    %66 = vector.shape_cast %65 : vector<8x8xf32> to vector<1x8x8xf32>
    %67 = vector.extract_strided_slice %56 {offsets = [0, 8], sizes = [8, 8], strides = [1, 1]} : vector<8x32xf32> to vector<8x8xf32>
    %68 = vector.shape_cast %67 : vector<8x8xf32> to vector<1x8x8xf32>
    "tpu.trace_start"() <{level = 10 : i32, message = "bld,bmd->blm"}> : () -> ()
    %cst_18 = arith.constant dense<0.000000e+00> : vector<1x8x8xf32>
    %69 = tpu.matmul %66, %68, %cst_18 {dimension_numbers = #tpu.dot_dimension_numbers<[2], [2], [1], [1], [0, 0, 0, 1, 1, 1], [0], [0]>} : vector<1x8x8xf32>, vector<1x8x8xf32>, vector<1x8x8xf32> -> vector<1x8x8xf32>
    "tpu.trace_stop"() : () -> ()
    %cst_19 = arith.constant 0.353553385 : f32
    %70 = vector.broadcast %cst_19 : f32 to vector<1x8x8xf32>
    %71 = arith.mulf %69, %70 : vector<1x8x8xf32>
    %72 = vector.extract_strided_slice %52 {offsets = [0, 16], sizes = [8, 8], strides = [1, 1]} : vector<8x32xf32> to vector<8x8xf32>
    %73 = vector.shape_cast %72 : vector<8x8xf32> to vector<1x8x8xf32>
    %74 = vector.extract_strided_slice %56 {offsets = [0, 16], sizes = [8, 8], strides = [1, 1]} : vector<8x32xf32> to vector<8x8xf32>
    %75 = vector.shape_cast %74 : vector<8x8xf32> to vector<1x8x8xf32>
    "tpu.trace_start"() <{level = 10 : i32, message = "bld,bmd->blm"}> : () -> ()
    %cst_20 = arith.constant dense<0.000000e+00> : vector<1x8x8xf32>
    %76 = tpu.matmul %73, %75, %cst_20 {dimension_numbers = #tpu.dot_dimension_numbers<[2], [2], [1], [1], [0, 0, 0, 1, 1, 1], [0], [0]>} : vector<1x8x8xf32>, vector<1x8x8xf32>, vector<1x8x8xf32> -> vector<1x8x8xf32>
    "tpu.trace_stop"() : () -> ()
    %cst_21 = arith.constant 0.353553385 : f32
    %77 = vector.broadcast %cst_21 : f32 to vector<1x8x8xf32>
    %78 = arith.mulf %76, %77 : vector<1x8x8xf32>
    %79 = vector.extract_strided_slice %52 {offsets = [0, 24], sizes = [8, 8], strides = [1, 1]} : vector<8x32xf32> to vector<8x8xf32>
    %80 = vector.shape_cast %79 : vector<8x8xf32> to vector<1x8x8xf32>
    %81 = vector.extract_strided_slice %56 {offsets = [0, 24], sizes = [8, 8], strides = [1, 1]} : vector<8x32xf32> to vector<8x8xf32>
    %82 = vector.shape_cast %81 : vector<8x8xf32> to vector<1x8x8xf32>
    "tpu.trace_start"() <{level = 10 : i32, message = "bld,bmd->blm"}> : () -> ()
    %cst_22 = arith.constant dense<0.000000e+00> : vector<1x8x8xf32>
    %83 = tpu.matmul %80, %82, %cst_22 {dimension_numbers = #tpu.dot_dimension_numbers<[2], [2], [1], [1], [0, 0, 0, 1, 1, 1], [0], [0]>} : vector<1x8x8xf32>, vector<1x8x8xf32>, vector<1x8x8xf32> -> vector<1x8x8xf32>
    "tpu.trace_stop"() : () -> ()
    %cst_23 = arith.constant 0.353553385 : f32
    %84 = vector.broadcast %cst_23 : f32 to vector<1x8x8xf32>
    %85 = arith.mulf %83, %84 : vector<1x8x8xf32>
    %86 = tpu.concatenate %64, %71, %78, %85 in 0 : vector<1x8x8xf32>, vector<1x8x8xf32>, vector<1x8x8xf32>, vector<1x8x8xf32> -> vector<4x8x8xf32>
    %cst_24 = arith.constant dense<0xFF800000> : vector<4x8xf32>
    %87 = vector.multi_reduction <maximumf>, %86, %cst_24 [2] : vector<4x8x8xf32> to vector<4x8xf32>
    %88 = vector.shape_cast %87 : vector<4x8xf32> to vector<4x8x1xf32>
    %89 = vector.broadcast %88 : vector<4x8x1xf32> to vector<4x8x8xf32>
    %90 = arith.subf %86, %89 : vector<4x8x8xf32>
    %91 = math.exp %90 : vector<4x8x8xf32>
    %cst_25 = arith.constant dense<0.000000e+00> : vector<4x8xf32>
    %92 = vector.multi_reduction <add>, %91, %cst_25 [2] : vector<4x8x8xf32> to vector<4x8xf32>
    %93 = vector.shape_cast %92 : vector<4x8xf32> to vector<4x8x1xf32>
    %94 = vector.broadcast %93 : vector<4x8x1xf32> to vector<4x8x8xf32>
    %95 = arith.divf %91, %94 : vector<4x8x8xf32>
    %96 = vector.extract_strided_slice %20 {offsets = [4, 0], sizes = [1, 32], strides = [1, 1]} : vector<9x32xf32> to vector<1x32xf32>
    %97 = vector.shape_cast %96 : vector<1x32xf32> to vector<1x32xf32>
    %98 = vector.broadcast %97 : vector<1x32xf32> to vector<8x32xf32>
    %99 = vector.extract_strided_slice %95 {offsets = [0, 0, 0], sizes = [1, 8, 8], strides = [1, 1, 1]} : vector<4x8x8xf32> to vector<1x8x8xf32>
    %100 = vector.extract_strided_slice %57 {offsets = [0, 0], sizes = [8, 32], strides = [1, 1]} : vector<8x128xf32> to vector<8x32xf32>
    %101 = vector.shape_cast %100 : vector<8x32xf32> to vector<1x8x32xf32>
    "tpu.trace_start"() <{level = 10 : i32, message = "blm,bmd->bld"}> : () -> ()
    %cst_26 = arith.constant dense<0.000000e+00> : vector<1x8x32xf32>
    %102 = tpu.matmul %99, %101, %cst_26 {dimension_numbers = #tpu.dot_dimension_numbers<[2], [1], [1], [2], [0, 0, 0, 1, 1, 2], [0], [0]>} : vector<1x8x8xf32>, vector<1x8x32xf32>, vector<1x8x32xf32> -> vector<1x8x32xf32>
    "tpu.trace_stop"() : () -> ()
    %103 = vector.shape_cast %102 : vector<1x8x32xf32> to vector<8x32xf32>
    %104 = arith.addf %98, %103 : vector<8x32xf32>
    %105 = vector.extract_strided_slice %95 {offsets = [1, 0, 0], sizes = [1, 8, 8], strides = [1, 1, 1]} : vector<4x8x8xf32> to vector<1x8x8xf32>
    %106 = vector.extract_strided_slice %57 {offsets = [0, 32], sizes = [8, 32], strides = [1, 1]} : vector<8x128xf32> to vector<8x32xf32>
    %107 = vector.shape_cast %106 : vector<8x32xf32> to vector<1x8x32xf32>
    "tpu.trace_start"() <{level = 10 : i32, message = "blm,bmd->bld"}> : () -> ()
    %cst_27 = arith.constant dense<0.000000e+00> : vector<1x8x32xf32>
    %108 = tpu.matmul %105, %107, %cst_27 {dimension_numbers = #tpu.dot_dimension_numbers<[2], [1], [1], [2], [0, 0, 0, 1, 1, 2], [0], [0]>} : vector<1x8x8xf32>, vector<1x8x32xf32>, vector<1x8x32xf32> -> vector<1x8x32xf32>
    "tpu.trace_stop"() : () -> ()
    %109 = vector.shape_cast %108 : vector<1x8x32xf32> to vector<8x32xf32>
    %110 = arith.addf %104, %109 : vector<8x32xf32>
    %111 = vector.extract_strided_slice %95 {offsets = [2, 0, 0], sizes = [1, 8, 8], strides = [1, 1, 1]} : vector<4x8x8xf32> to vector<1x8x8xf32>
    %112 = vector.extract_strided_slice %57 {offsets = [0, 64], sizes = [8, 32], strides = [1, 1]} : vector<8x128xf32> to vector<8x32xf32>
    %113 = vector.shape_cast %112 : vector<8x32xf32> to vector<1x8x32xf32>
    "tpu.trace_start"() <{level = 10 : i32, message = "blm,bmd->bld"}> : () -> ()
    %cst_28 = arith.constant dense<0.000000e+00> : vector<1x8x32xf32>
    %114 = tpu.matmul %111, %113, %cst_28 {dimension_numbers = #tpu.dot_dimension_numbers<[2], [1], [1], [2], [0, 0, 0, 1, 1, 2], [0], [0]>} : vector<1x8x8xf32>, vector<1x8x32xf32>, vector<1x8x32xf32> -> vector<1x8x32xf32>
    "tpu.trace_stop"() : () -> ()
    %115 = vector.shape_cast %114 : vector<1x8x32xf32> to vector<8x32xf32>
    %116 = arith.addf %110, %115 : vector<8x32xf32>
    %117 = vector.extract_strided_slice %95 {offsets = [3, 0, 0], sizes = [1, 8, 8], strides = [1, 1, 1]} : vector<4x8x8xf32> to vector<1x8x8xf32>
    %118 = vector.extract_strided_slice %57 {offsets = [0, 96], sizes = [8, 32], strides = [1, 1]} : vector<8x128xf32> to vector<8x32xf32>
    %119 = vector.shape_cast %118 : vector<8x32xf32> to vector<1x8x32xf32>
    "tpu.trace_start"() <{level = 10 : i32, message = "blm,bmd->bld"}> : () -> ()
    %cst_29 = arith.constant dense<0.000000e+00> : vector<1x8x32xf32>
    %120 = tpu.matmul %117, %119, %cst_29 {dimension_numbers = #tpu.dot_dimension_numbers<[2], [1], [1], [2], [0, 0, 0, 1, 1, 2], [0], [0]>} : vector<1x8x8xf32>, vector<1x8x32xf32>, vector<1x8x32xf32> -> vector<1x8x32xf32>
    "tpu.trace_stop"() : () -> ()
    %121 = vector.shape_cast %120 : vector<1x8x32xf32> to vector<8x32xf32>
    %122 = arith.addf %116, %121 : vector<8x32xf32>
    %123 = vector.extract_strided_slice %20 {offsets = [5, 0], sizes = [1, 32], strides = [1, 1]} : vector<9x32xf32> to vector<1x32xf32>
    %124 = vector.extract_strided_slice %20 {offsets = [6, 0], sizes = [1, 32], strides = [1, 1]} : vector<9x32xf32> to vector<1x32xf32>
    %cst_30 = arith.constant dense<0.000000e+00> : vector<8xf32>
    %125 = vector.multi_reduction <add>, %122, %cst_30 [1] : vector<8x32xf32> to vector<8xf32>
    %126 = vector.shape_cast %125 : vector<8xf32> to vector<8x1xf32>
    %cst_31 = arith.constant 3.200000e+01 : f32
    %127 = vector.broadcast %cst_31 : f32 to vector<8x1xf32>
    %128 = arith.divf %126, %127 : vector<8x1xf32>
    %129 = vector.broadcast %128 : vector<8x1xf32> to vector<8x32xf32>
    %130 = arith.subf %122, %129 : vector<8x32xf32>
    %131 = arith.mulf %130, %130 : vector<8x32xf32>
    %cst_32 = arith.constant dense<0.000000e+00> : vector<8xf32>
    %132 = vector.multi_reduction <add>, %131, %cst_32 [1] : vector<8x32xf32> to vector<8xf32>
    %133 = vector.shape_cast %132 : vector<8xf32> to vector<8x1xf32>
    %cst_33 = arith.constant 3.200000e+01 : f32
    %134 = vector.broadcast %cst_33 : f32 to vector<8x1xf32>
    %135 = arith.divf %133, %134 : vector<8x1xf32>
    %cst_34 = arith.constant 9.99999974E-6 : f32
    %136 = vector.broadcast %cst_34 : f32 to vector<8x1xf32>
    %137 = arith.addf %135, %136 : vector<8x1xf32>
    %138 = math.rsqrt %137 : vector<8x1xf32>
    %139 = vector.broadcast %138 : vector<8x1xf32> to vector<8x32xf32>
    %140 = arith.mulf %130, %139 : vector<8x32xf32>
    %141 = vector.broadcast %123 : vector<1x32xf32> to vector<8x32xf32>
    %142 = arith.mulf %140, %141 : vector<8x32xf32>
    %143 = vector.broadcast %124 : vector<1x32xf32> to vector<8x32xf32>
    %144 = arith.addf %142, %143 : vector<8x32xf32>
    %cst_35 = arith.constant dense<0.000000e+00> : vector<8x32xf32>
    %145 = tpu.matmul %144, %22, %cst_35 {dimension_numbers = #tpu.dot_dimension_numbers<[1], [0], [0], [1], [0, 0, 1, 1], [], []>} : vector<8x32xf32>, vector<32x32xf32>, vector<8x32xf32> -> vector<8x32xf32>
    %146 = vector.extract_strided_slice %20 {offsets = [7, 0], sizes = [1, 32], strides = [1, 1]} : vector<9x32xf32> to vector<1x32xf32>
    %147 = vector.broadcast %146 : vector<1x32xf32> to vector<8x32xf32>
    %148 = arith.addf %145, %147 : vector<8x32xf32>
    %cst_36 = arith.constant 0.000000e+00 : f32
    %149 = vector.broadcast %cst_36 : f32 to vector<8x32xf32>
    %150 = arith.cmpf oge, %148, %149 : vector<8x32xf32>
    %cst_37 = arith.constant 2.000000e-01 : f32
    %151 = vector.broadcast %cst_37 : f32 to vector<8x32xf32>
    %152 = arith.mulf %151, %148 : vector<8x32xf32>
    %153 = arith.select %150, %148, %152 : vector<8x32xi1>, vector<8x32xf32>
    %cst_38 = arith.constant dense<0.000000e+00> : vector<8x32xf32>
    %154 = tpu.matmul %153, %24, %cst_38 {dimension_numbers = #tpu.dot_dimension_numbers<[1], [0], [0], [1], [0, 0, 1, 1], [], []>} : vector<8x32xf32>, vector<32x32xf32>, vector<8x32xf32> -> vector<8x32xf32>
    %155 = vector.extract_strided_slice %20 {offsets = [8, 0], sizes = [1, 32], strides = [1, 1]} : vector<9x32xf32> to vector<1x32xf32>
    %156 = vector.broadcast %155 : vector<1x32xf32> to vector<8x32xf32>
    %157 = arith.addf %154, %156 : vector<8x32xf32>
    %cst_39 = arith.constant 0.000000e+00 : f32
    %158 = vector.broadcast %cst_39 : f32 to vector<8x32xf32>
    %159 = arith.cmpf oge, %157, %158 : vector<8x32xf32>
    %cst_40 = arith.constant 2.000000e-01 : f32
    %160 = vector.broadcast %cst_40 : f32 to vector<8x32xf32>
    %161 = arith.mulf %160, %157 : vector<8x32xf32>
    %162 = arith.select %159, %157, %161 : vector<8x32xi1>, vector<8x32xf32>
    %163 = vector.shape_cast %162 : vector<8x32xf32> to vector<1x8x32xf32>
    %164 = vector.extract_strided_slice %163 {offsets = [0, 0, 0], sizes = [1, 1, 32], strides = [1, 1, 1]} : vector<1x8x32xf32> to vector<1x1x32xf32>
    %165 = vector.shape_cast %164 : vector<1x1x32xf32> to vector<1x32xf32>
    %166 = vector.extract_strided_slice %163 {offsets = [0, 1, 0], sizes = [1, 1, 32], strides = [1, 1, 1]} : vector<1x8x32xf32> to vector<1x1x32xf32>
    %167 = vector.shape_cast %166 : vector<1x1x32xf32> to vector<1x32xf32>
    %168 = vector.extract_strided_slice %163 {offsets = [0, 2, 0], sizes = [1, 1, 32], strides = [1, 1, 1]} : vector<1x8x32xf32> to vector<1x1x32xf32>
    %169 = vector.shape_cast %168 : vector<1x1x32xf32> to vector<1x32xf32>
    %170 = vector.extract_strided_slice %163 {offsets = [0, 3, 0], sizes = [1, 1, 32], strides = [1, 1, 1]} : vector<1x8x32xf32> to vector<1x1x32xf32>
    %171 = vector.shape_cast %170 : vector<1x1x32xf32> to vector<1x32xf32>
    %172 = vector.extract_strided_slice %163 {offsets = [0, 4, 0], sizes = [1, 1, 32], strides = [1, 1, 1]} : vector<1x8x32xf32> to vector<1x1x32xf32>
    %173 = vector.shape_cast %172 : vector<1x1x32xf32> to vector<1x32xf32>
    %174 = vector.extract_strided_slice %163 {offsets = [0, 5, 0], sizes = [1, 1, 32], strides = [1, 1, 1]} : vector<1x8x32xf32> to vector<1x1x32xf32>
    %175 = vector.shape_cast %174 : vector<1x1x32xf32> to vector<1x32xf32>
    %176 = vector.extract_strided_slice %163 {offsets = [0, 6, 0], sizes = [1, 1, 32], strides = [1, 1, 1]} : vector<1x8x32xf32> to vector<1x1x32xf32>
    %177 = vector.shape_cast %176 : vector<1x1x32xf32> to vector<1x32xf32>
    %178 = vector.extract_strided_slice %163 {offsets = [0, 7, 0], sizes = [1, 1, 32], strides = [1, 1, 1]} : vector<1x8x32xf32> to vector<1x1x32xf32>
    %179 = vector.shape_cast %178 : vector<1x1x32xf32> to vector<1x32xf32>
    %180 = tpu.concatenate %165, %167, %169, %171, %173, %175, %177, %179 in 1 : vector<1x32xf32>, vector<1x32xf32>, vector<1x32xf32>, vector<1x32xf32>, vector<1x32xf32>, vector<1x32xf32>, vector<1x32xf32>, vector<1x32xf32> -> vector<1x256xf32>
    %c0_41 = arith.constant 0 : index
    %c0_42 = arith.constant 0 : index
    %c0_43 = arith.constant 0 : index
    %181 = vector.load %arg5[%c0_41, %c0_42, %c0_43] : memref<1x1x256xf32, #tpu.memory_space<vmem>>, vector<1x1x256xf32>
    %182 = vector.shape_cast %181 : vector<1x1x256xf32> to vector<1x256xf32>
    %183 = vector.shape_cast %180 : vector<1x256xf32> to vector<1x1x256xf32>
    tpu.vector_store %arg5[%c0_41, %c0_42, %c0_43], %183 {strides = array<i32>} : memref<1x1x256xf32, #tpu.memory_space<vmem>>, vector<1x1x256xf32>,
    return
  }
  func.func @transform_0(%arg0: i32) -> (i32, i32, i32) {
    %c0_i32 = arith.constant 0 : i32
    %c0_i32_0 = arith.constant 0 : i32
    %c0_i32_1 = arith.constant 0 : i32
    return %arg0, %c0_i32, %c0_i32_0 : i32, i32, i32
  }
  func.func @transform_1(%arg0: i32) -> (i32, i32) {
    %c0_i32 = arith.constant 0 : i32
    %c0_i32_0 = arith.constant 0 : i32
    %c0_i32_1 = arith.constant 0 : i32
    return %c0_i32, %c0_i32_0 : i32, i32
  }
  func.func @transform_2(%arg0: i32) -> (i32, i32, i32) {
    %c0_i32 = arith.constant 0 : i32
    %c0_i32_0 = arith.constant 0 : i32
    %c0_i32_1 = arith.constant 0 : i32
    %c0_i32_2 = arith.constant 0 : i32
    return %c0_i32, %c0_i32_0, %c0_i32_1 : i32, i32, i32
  }
  func.func @transform_3(%arg0: i32) -> (i32, i32) {
    %c0_i32 = arith.constant 0 : i32
    %c0_i32_0 = arith.constant 0 : i32
    %c0_i32_1 = arith.constant 0 : i32
    return %c0_i32, %c0_i32_0 : i32, i32
  }
  func.func @transform_4(%arg0: i32) -> (i32, i32, i32) {
    %c0_i32 = arith.constant 0 : i32
    %c0_i32_0 = arith.constant 0 : i32
    %c0_i32_1 = arith.constant 0 : i32
    return %arg0, %c0_i32, %c0_i32_0 : i32, i32, i32
  }
}

</mosaic_0001>

<llo_original>
// kernel: tpu_custom_call.1
$region0: #{tpu_custom_call.1}
  #allocation0 [shape = 'u32[]', space=smem, size = 0x4, offset = 0x4, fixed_abs, tag = 'smem constant byte address 0x4 - core index']
  #allocation1 [shape = 'u32[144,128]{1,0:T(1,128)}', space=vmem, size = 0x12000, scoped, tag = 'internal scratch']
  %s0 = inlined_call_operand.hbm [shape: f32[2,1,256], index: 0, kind: input, shape index: {}]
  %s1 = inlined_call_operand.hbm [shape: f32[32,192], index: 1, kind: input, shape index: {}]
  %s2 = inlined_call_operand.hbm [shape: f32[2,32,32], index: 2, kind: input, shape index: {}]
  %s3 = inlined_call_operand.hbm [shape: f32[9,32], index: 3, kind: input, shape index: {}]
  %s4 = inlined_call_operand.hbm [shape: f32[2,1,256], index: 4, kind: output, shape index: {}]
  %s5 = sld [smem:[#allocation0]]
  $region65: #{tpu_custom_call.1} parent=0
    _
  %s7 = ssub.s32 1, %s5
  %s8 = scalar_select 0, %s7, %s5
  $region1: #{tpu_custom_call.1} parent=0
    #allocation2 [shape = 'u8[2048]{0}', space=vmem, size = 0x800, scoped, tag = 'input window, operand 0']
    #allocation3 [shape = 's32[2]{0}', space=sflag, size = 0x8, scoped, tag = 'scoped memory for tpu_custom_call.1']
    #allocation4 [shape = 's32[2]{0}', space=sflag, size = 0x8, scoped, tag = 'scoped memory for tpu_custom_call.1']
    #allocation5 [shape = 'u8[32768]{0}', space=vmem, size = 0x8000, scoped, tag = 'input window, operand 1, single buffered']
    #allocation6 [shape = 's32[1]{0}', space=sflag, size = 0x4, scoped, tag = 'scoped memory for tpu_custom_call.1']
    #allocation7 [shape = 'u8[32768]{0}', space=vmem, size = 0x8000, scoped, tag = 'input window, operand 2, single buffered']
    #allocation8 [shape = 'u8[8192]{0}', space=vmem, size = 0x2000, scoped, tag = 'input window, operand 3, single buffered']
    #allocation9 [shape = 's32[1]{0}', space=sflag, size = 0x4, scoped, tag = 'scoped memory for tpu_custom_call.1']
    #allocation10 [shape = 'u8[2048]{0}', space=vmem, size = 0x800, scoped, tag = 'output window, operand 0']
    %9 = vsyncpa [#allocation3], 0
    %s10 = scalar_lea.sflag [#allocation3], 1
    %11 = vsyncpa %s10, 0
    %12 = vsyncpa [#allocation6], 0
    %13 = vsyncpa [#allocation9], 0
    %14 = vsyncpa [#allocation4], 0
    %s15 = scalar_lea.sflag [#allocation4], 1
    %16 = vsyncpa %s15, 0
    loop: start=0, step=1, limit=4
    $region2: #{tpu_custom_call.1} parent=1 // loop_pre_header
      _
    $region3: #{tpu_custom_call.1} parent=1 // loop_header
      %s18 = sphi 0, %s22
      %p19 = scmp.ge.s32.totalorder %s18, 4
      %s28 = sphi 0, %s30
      %s31 = sphi 0, %s28
      %s32 = sphi 0, %s31
      %s48 = sphi 0, %s32
      %s52 = sphi 0, %s52
      %s54 = sphi 0, %s52
      %s55 = sphi 0, %s54
      %s69 = sphi 0, %s55
      %s73 = sphi 0, %s73
      %s75 = sphi 0, %s73
      %s76 = sphi 0, %s75
      %s90 = sphi 0, %s76
      %s94 = sphi 0, %s94
      %s96 = sphi 0, %s94
      %s97 = sphi 0, %s96
      %s111 = sphi 0, %s97
      %s117 = sphi 0, %s119
      %s120 = sphi 0, %s117
      %s121 = sphi 0, %s120
      %s137 = sphi 0, %s121
    $region4: #{tpu_custom_call.1} parent=1 // loop_header_branch
      %21 = sbr.rel (%p19) target = $region8
    $region5: #{tpu_custom_call.1} parent=1 // loop_body
      %s23 = ssub.s32 %s18, 1
      %s24 = ssub.s32 %s18, 2
      %s25 = sadd.s32 %s18, 1
      %s26 = ssub.s32 %s18, %s25
      %p27 = scmp.eq.s32.totalorder %s26, 0
      %s29 = sadd.s32 %s28, 1
      %s30 = scalar_select %p27, %s28, %s29
      %p33 = pneg %p27
      %p34 = scmp.eq.s32.totalorder %s18, 1
      %p35 = por %p33, %p34
      %p36 = scmp.ne.s32.totalorder %s28, %s31
      %p37 = scmp.eq.s32.totalorder %s18, 0
      %p38 = por %p36, %p37
      %p39 = scmp.ne.s32.totalorder %s28, %s31
      %p40 = scmp.eq.s32.totalorder %s23, 1
      %p41 = por %p39, %p40
      %p42 = scmp.ne.s32.totalorder %s31, %s32
      %p43 = scmp.eq.s32.totalorder %s23, 0
      %p44 = por %p42, %p43
      %p45 = scmp.ne.s32.totalorder %s31, %s32
      %p46 = scmp.eq.s32.totalorder %s24, 1
      %p47 = por %p45, %p46
      %p49 = scmp.ne.s32.totalorder %s32, %s48
      %p50 = scmp.eq.s32.totalorder %s24, 0
      %p51 = por %p49, %p50
      %s53 = sadd.s32 %s52, 1
      %p56 = scmp.eq.s32.totalorder %s18, 1
      %p57 = scmp.ne.s32.totalorder %s52, %s54
      %p58 = scmp.eq.s32.totalorder %s18, 0
      %p59 = por %p57, %p58
      %p60 = scmp.ne.s32.totalorder %s52, %s54
      %p61 = scmp.eq.s32.totalorder %s23, 1
      %p62 = por %p60, %p61
      %p63 = scmp.ne.s32.totalorder %s54, %s55
      %p64 = scmp.eq.s32.totalorder %s23, 0
      %p65 = por %p63, %p64
      %p66 = scmp.ne.s32.totalorder %s54, %s55
      %p67 = scmp.eq.s32.totalorder %s24, 1
      %p68 = por %p66, %p67
      %p70 = scmp.ne.s32.totalorder %s55, %s69
      %p71 = scmp.eq.s32.totalorder %s24, 0
      %p72 = por %p70, %p71
      %s74 = sadd.s32 %s73, 1
      %p77 = scmp.eq.s32.totalorder %s18, 1
      %p78 = scmp.ne.s32.totalorder %s73, %s75
      %p79 = scmp.eq.s32.totalorder %s18, 0
      %p80 = por %p78, %p79
      %p81 = scmp.ne.s32.totalorder %s73, %s75
      %p82 = scmp.eq.s32.totalorder %s23, 1
      %p83 = por %p81, %p82
      %p84 = scmp.ne.s32.totalorder %s75, %s76
      %p85 = scmp.eq.s32.totalorder %s23, 0
      %p86 = por %p84, %p85
      %p87 = scmp.ne.s32.totalorder %s75, %s76
      %p88 = scmp.eq.s32.totalorder %s24, 1
      %p89 = por %p87, %p88
      %p91 = scmp.ne.s32.totalorder %s76, %s90
      %p92 = scmp.eq.s32.totalorder %s24, 0
      %p93 = por %p91, %p92
      %s95 = sadd.s32 %s94, 1
      %p98 = scmp.eq.s32.totalorder %s18, 1
      %p99 = scmp.ne.s32.totalorder %s94, %s96
      %p100 = scmp.eq.s32.totalorder %s18, 0
      %p101 = por %p99, %p100
      %p102 = scmp.ne.s32.totalorder %s94, %s96
      %p103 = scmp.eq.s32.totalorder %s23, 1
      %p104 = por %p102, %p103
      %p105 = scmp.ne.s32.totalorder %s96, %s97
      %p106 = scmp.eq.s32.totalorder %s23, 0
      %p107 = por %p105, %p106
      %p108 = scmp.ne.s32.totalorder %s96, %s97
      %p109 = scmp.eq.s32.totalorder %s24, 1
      %p110 = por %p108, %p109
      %p112 = scmp.ne.s32.totalorder %s97, %s111
      %p113 = scmp.eq.s32.totalorder %s24, 0
      %p114 = por %p112, %p113
      %s115 = ssub.s32 %s18, %s25
      %p116 = scmp.eq.s32.totalorder %s115, 0
      %s118 = sadd.s32 %s117, 1
      %s119 = scalar_select %p116, %s117, %s118
      %p122 = pneg %p116
      %p123 = scmp.eq.s32.totalorder %s18, 1
      %p124 = por %p122, %p123
      %p125 = scmp.ne.s32.totalorder %s117, %s120
      %p126 = scmp.eq.s32.totalorder %s18, 0
      %p127 = por %p125, %p126
      %p128 = scmp.ne.s32.totalorder %s117, %s120
      %p129 = scmp.eq.s32.totalorder %s23, 1
      %p130 = por %p128, %p129
      %p131 = scmp.ne.s32.totalorder %s120, %s121
      %p132 = scmp.eq.s32.totalorder %s23, 0
      %p133 = por %p131, %p132
      %p134 = scmp.ne.s32.totalorder %s120, %s121
      %p135 = scmp.eq.s32.totalorder %s24, 1
      %p136 = por %p134, %p135
      %p138 = scmp.ne.s32.totalorder %s121, %s137
      %p139 = scmp.eq.s32.totalorder %s24, 0
      %p140 = por %p138, %p139
      %p141 = scmp.le.s32.totalorder 1, %s18
      %p142 = scmp.lt.s32.totalorder %s18, 3
      %p143 = pnand %p141, %p142
      %p144 = pneg %p143
      // Predicated region
      $region9: #{tpu_custom_call.1} parent=5 // pred_check
        _
      $region10: #{tpu_custom_call.1} parent=5 // pred_check_branch
        %146 = sbr.rel (%p143) target = $region12
      $region11: #{tpu_custom_call.1} parent=5 // pred_region
        %s147 = ssub.s32 %s18, 1
        // Predicated region
        $region13: #{tpu_custom_call.1} parent=11 // pred_check
          %p148 = pneg %p65
        $region14: #{tpu_custom_call.1} parent=11 // pred_check_branch
          %150 = sbr.rel (%p148) target = $region16
        $region15: #{tpu_custom_call.1} parent=11 // pred_region
          %s152 = ssub.s32 1024, 1024
          %153 = vsyncadd [#allocation6], %s152
          %s154 = sshll.u32 [#allocation5], 4
          %s155 = int_to_ptr.vmem [resolvable:$true] %s154
          %160 = dma.hbm_to_vmem [thread:$0]  %s1, 1024, %s155, [#allocation6], 256, 256, 16
        $region16: #{tpu_custom_call.1} parent=11 // pred_fallthru
          _
        // Predicated region
        $region17: #{tpu_custom_call.1} parent=11 // pred_check
          %p161 = pneg %p86
        $region18: #{tpu_custom_call.1} parent=11 // pred_check_branch
          %163 = sbr.rel (%p161) target = $region20
        $region19: #{tpu_custom_call.1} parent=11 // pred_region
          %s165 = ssub.s32 1024, 1024
          %166 = vsyncadd [#allocation6], %s165
          %s167 = sshll.u32 [#allocation7], 4
          %s168 = int_to_ptr.vmem [resolvable:$true] %s167
          %173 = dma.hbm_to_vmem [thread:$0]  %s2, 1024, %s168, [#allocation6], 128, 128, 8
        $region20: #{tpu_custom_call.1} parent=11 // pred_fallthru
          _
        // Predicated region
        $region21: #{tpu_custom_call.1} parent=11 // pred_check
          %p174 = pneg %p107
        $region22: #{tpu_custom_call.1} parent=11 // pred_check_branch
          %176 = sbr.rel (%p174) target = $region24
        $region23: #{tpu_custom_call.1} parent=11 // pred_region
          %s178 = ssub.s32 256, 256
          %179 = vsyncadd [#allocation9], %s178
          %s180 = sshll.u32 [#allocation8], 4
          %s181 = int_to_ptr.vmem [resolvable:$true] %s180
          %186 = dma.hbm_to_vmem [thread:$0]  %s3, 256, %s181, [#allocation9], 128, 128, 8
        $region24: #{tpu_custom_call.1} parent=11 // pred_fallthru
          _
      $region12: #{tpu_custom_call.1} parent=5 // pred_fallthru
        _
      %p187 = scmp.lt.s32.totalorder %s18, 2
      // Predicated region
      $region25: #{tpu_custom_call.1} parent=5 // pred_check
        %p188 = pneg %p187
      $region26: #{tpu_custom_call.1} parent=5 // pred_check_branch
        %190 = sbr.rel (%p188) target = $region28
      $region27: #{tpu_custom_call.1} parent=5 // pred_region
        // Predicated region
        $region29: #{tpu_custom_call.1} parent=27 // pred_check
          %p191 = pneg %p38
        $region30: #{tpu_custom_call.1} parent=27 // pred_check_branch
          %193 = sbr.rel (%p191) target = $region32
        $region31: #{tpu_custom_call.1} parent=27 // pred_region
          %s194 = sand.u32 %s28, 1
          %s195 = scalar_lea.sflag [#allocation3], %s194
          %s196 = sand.u32 %s28, 1
          %s197 = smul.addr %s196, 2
          %s198 = scalar_lea.vmem [#allocation2], %s197
          %s200 = ssub.s32 32, 32
          %201 = vsyncadd %s195, %s200
          %s202 = smul.addr %s18, 2
          %s203 = smul.addr %s202, 16
          %s204 = scalar_lea.hbm %s0, %s203
          %s206 = sshll.u32 %s198, 4
          %s207 = int_to_ptr.vmem [resolvable:$true] %s206
          %209 = dma.hbm_to_vmem [thread:$0]  %s204, 32, %s207, %s195
        $region32: #{tpu_custom_call.1} parent=27 // pred_fallthru
          _
      $region28: #{tpu_custom_call.1} parent=5 // pred_fallthru
        _
      %p210 = scmp.le.s32.totalorder 1, %s18
      %p211 = scmp.lt.s32.totalorder %s18, 3
      %p212 = pnand %p210, %p211
      %p213 = pneg %p212
      // Predicated region
      $region33: #{tpu_custom_call.1} parent=5 // pred_check
        _
      $region34: #{tpu_custom_call.1} parent=5 // pred_check_branch
        %215 = sbr.rel (%p212) target = $region36
      $region35: #{tpu_custom_call.1} parent=5 // pred_region
        %s216 = ssub.s32 %s18, 1
        %s217 = sand.u32 %s31, 1
        %s218 = scalar_lea.sflag [#allocation3], %s217
        %s219 = sand.u32 %s31, 1
        %s220 = smul.addr %s219, 2
        %s221 = scalar_lea.vmem [#allocation2], %s220
        // Predicated region
        $region37: #{tpu_custom_call.1} parent=35 // pred_check
          %p222 = pneg %p44
        $region38: #{tpu_custom_call.1} parent=35 // pred_check_branch
          %224 = sbr.rel (%p222) target = $region40
        $region39: #{tpu_custom_call.1} parent=35 // pred_region
          %225 = dma.done %s218, 32
        $region40: #{tpu_custom_call.1} parent=35 // pred_fallthru
          _
        // Predicated region
        $region41: #{tpu_custom_call.1} parent=35 // pred_check
          %p226 = pneg %p65
        $region42: #{tpu_custom_call.1} parent=35 // pred_check_branch
          %228 = sbr.rel (%p226) target = $region44
        $region43: #{tpu_custom_call.1} parent=35 // pred_region
          %229 = dma.done [#allocation6], 1024
        $region44: #{tpu_custom_call.1} parent=35 // pred_fallthru
          _
        // Predicated region
        $region45: #{tpu_custom_call.1} parent=35 // pred_check
          %p230 = pneg %p86
        $region46: #{tpu_custom_call.1} parent=35 // pred_check_branch
          %232 = sbr.rel (%p230) target = $region48
        $region47: #{tpu_custom_call.1} parent=35 // pred_region
          %233 = dma.done [#allocation6], 1024
        $region48: #{tpu_custom_call.1} parent=35 // pred_fallthru
          _
        // Predicated region
        $region49: #{tpu_custom_call.1} parent=35 // pred_check
          %p234 = pneg %p107
        $region50: #{tpu_custom_call.1} parent=35 // pred_check_branch
          %236 = sbr.rel (%p234) target = $region52
        $region51: #{tpu_custom_call.1} parent=35 // pred_region
          %237 = dma.done [#allocation9], 256
        $region52: #{tpu_custom_call.1} parent=35 // pred_fallthru
          _
        %s238 = sand.u32 %s31, 1
        %s239 = scalar_lea.sflag [#allocation3], %s238
        %s240 = sand.u32 %s31, 1
        %s241 = smul.addr %s240, 2
        %s242 = scalar_lea.vmem [#allocation2], %s241
        %p243 = pneg %p44
        %p244 = pneg %p41
        %p245 = pneg %p65
        %p246 = pneg %p62
        %p247 = pneg %p86
        %p248 = pneg %p83
        %p249 = pneg %p107
        %p250 = pneg %p104
        %p251 = pneg %p133
        %p252 = pneg %p130
        %s253 = sand.u32 %s120, 1
        %s254 = scalar_lea.sflag [#allocation4], %s253
        %s255 = sand.u32 %s120, 1
        %s256 = smul.addr %s255, 2
        %s257 = scalar_lea.vmem [#allocation10], %s256
        %v258 = vld [vmem:[%s221] sm:$0x3]
        %v260 = vrot.slane %v258, 1
        %261 = vrot.lane.b32.xlu0 %v258, 96
        %v262 = vpop.permute.xlu0 %261
        %v263 = vrot.slane %v262, 1
        %264 = vrot.lane.b32.xlu0 %v258, 64
        %v265 = vpop.permute.xlu0 %264
        %v266 = vrot.slane %v265, 1
        %267 = vrot.lane.b32.xlu0 %v258, 32
        %v268 = vpop.permute.xlu0 %267
        %v269 = vrot.slane %v268, 1
        %v270 = vlaneseq
        %v271 = vshrl.u32 %v270, 7
        %v272 = vsub.s32 0, %v271
        %v273 = vrot.slane %v258, %v272
        %274 = vrot.lane.b32.xlu0 %v273, 96
        %v275 = vpop.permute.xlu0 %274
        %277 = vrot.lane.b32.xlu0 %v273, 64
        %v278 = vpop.permute.xlu0 %277
        %280 = vrot.lane.b32.xlu0 %v273, 32
        %v281 = vpop.permute.xlu0 %280
        %v283 = vlaneseq
        %v284 = vshrl.u32 %v283, 7
        %v285 = vsub.s32 0, %v284
        %v286 = vrot.slane %v260, %v285
        %v288 = vlaneseq
        %v289 = vshrl.u32 %v288, 7
        %v290 = vsub.s32 0, %v289
        %v291 = vrot.slane %v263, %v290
        %v293 = vlaneseq
        %v294 = vshrl.u32 %v293, 7
        %v295 = vsub.s32 0, %v294
        %v296 = vrot.slane %v266, %v295
        %v298 = vlaneseq
        %v299 = vshrl.u32 %v298, 7
        %v300 = vsub.s32 0, %v299
        %v301 = vrot.slane %v269, %v300
        %vm303 = vcmask 1040384
        %v304 = vsel %vm303, %v258, %v275
        %vm305 = vcmask 1041408
        %v306 = vsel %vm305, %v304, %v278
        %vm307 = vcmask 1042432
        %v308 = vsel %vm307, %v306, %v281
        %vm309 = vcmask 1043456
        %v310 = vsel %vm309, %v308, %v286
        %vm311 = vcmask 1044480
        %v312 = vsel %vm311, %v310, %v291
        %vm313 = vcmask 1045504
        %v314 = vsel %vm313, %v312, %v296
        %vm315 = vcmask 1046528
        %v316 = vsel %vm315, %v314, %v301
        %v317 = vld [vmem:[#allocation8] sm:$0xff]
        %v318 = vld [vmem:[#allocation8 + $0x8] sm:$0x1]
        %v319 = vld [vmem:[#allocation7] sm:$0xff]
        %v320 = vld [vmem:[#allocation7 + $0x8] sm:$0xff]
        %v321 = vld [vmem:[#allocation7 + $0x10] sm:$0xff]
        %v322 = vld [vmem:[#allocation7 + $0x18] sm:$0xff]
        %s323 = scalar_lea.vmem [#allocation7], 32
        %v324 = vld [vmem:[%s323] sm:$0xff]
        %v325 = vld [vmem:[%s323 + $0x8] sm:$0xff]
        %v326 = vld [vmem:[%s323 + $0x10] sm:$0xff]
        %v327 = vld [vmem:[%s323 + $0x18] sm:$0xff]
        %vm328 = vcmask 261120
        %v329 = vsel %vm328, %v316, 0.0
        %330 = vadd.xlane.f32.xlu0 %v329
        %v331 = vpop.xlane.xlu0 %330
        %v332 = vrcp.pop 32.0
        %v333 = vmul.f32 %v331, %v332
        %v334 = vsub.f32 %v316, %v333
        %v335 = vmul.f32 %v334, %v334
        %v336 = vsel %vm328, %v335, 0.0
        %337 = vadd.xlane.f32.xlu0 %v336
        %v338 = vpop.xlane.xlu0 %337
        %v339 = vmul.f32 %v338, %v332
        %v340 = vadd.f32 %v339, 1e-05
        %v341 = vrsqrt.pop %v340
        %v342 = vmul.f32 %v334, %v341
        %v343 = vlaneseq
        %v344 = vshrl.u32 %v343, 7
        %v345 = vsub.s32 0, %v344
        %v346 = vrot.slane %v317, %v345
        %v347 = vmul.f32 %v342, %v346
        %v348 = vlaneseq
        %v349 = vshrl.u32 %v348, 7
        %v350 = vsub.s32 1, %v349
        %v351 = vrot.slane %v317, %v350
        %v352 = vadd.f32 %v347, %v351
        %v353 = vld [vmem:[#allocation5] sm:$0xff]
        %v354 = vld [vmem:[#allocation5 + $0x8] sm:$0xff]
        %v355 = vld [vmem:[#allocation5 + $0x10] sm:$0xff]
        %v356 = vld [vmem:[#allocation5 + $0x18] sm:$0xff]
        %v357 = vld [vmem:[#allocation5 + $0x20] sm:$0xff]
        %v358 = vld [vmem:[#allocation5 + $0x28] sm:$0xff]
        %v359 = vld [vmem:[#allocation5 + $0x30] sm:$0xff]
        %v360 = vld [vmem:[#allocation5 + $0x38] sm:$0xff]
        %v362 = vsel %vm328, %v352, 0
        %364 = vmatprep.subr.mxu0 %v354
        %365 = vmatpush1.msra.mxu0 %v353
        %366 = vmatprep.subr.mxu0 %v356
        %367 = vmatpush1.msra.mxu0 %v355
        %368 = vmatprep.subr.mxu0 %v358
        %369 = vmatpush1.msra.mxu0 %v357
        %370 = vmatprep.subr.mxu0 %v360
        %371 = vmatpush1.msra.mxu0 %v359
        %372 = vmatprep.subr.mxu0 0.0
        %373 = vmatpush1.msra.mxu0 0.0
        %374 = vmatprep.subr.mxu0 0.0
        %375 = vmatpush1.msra.mxu0 0.0
        %376 = vmatprep.subr.mxu0 0.0
        %377 = vmatpush1.msra.mxu0 0.0
        %378 = vmatprep.subr.mxu0 0.0
        %379 = vmatpush1.msra.mxu0 0.0
        %380 = vmatprep.subr.mxu0 0.0
        %381 = vmatpush1.msra.mxu0 0.0
        %382 = vmatprep.subr.mxu0 0.0
        %383 = vmatpush1.msra.mxu0 0.0
        %384 = vmatprep.subr.mxu0 0.0
        %385 = vmatpush1.msra.mxu0 0.0
        %386 = vmatprep.subr.mxu0 0.0
        %387 = vmatpush1.msra.mxu0 0.0
        %388 = vmatprep.subr.mxu0 0.0
        %389 = vmatpush1.msra.mxu0 0.0
        %390 = vmatprep.subr.mxu0 0.0
        %391 = vmatpush1.msra.mxu0 0.0
        %392 = vmatprep.subr.mxu0 0.0
        %393 = vmatpush1.msra.mxu0 0.0
        %394 = vmatprep.subr.mxu0 0.0
        %395 = vmatpush1.msra.mxu0 0.0
        %396 = vmatprep.subr.mxu0 0.0
        %397 = vmatpush1.msra.mxu0 0.0
        %398 = vmatprep.subr.mxu0 0.0
        %399 = vmatpush1.msra.mxu0 0.0
        %400 = vmatprep.subr.mxu0 0.0
        %401 = vmatpush1.msra.mxu0 0.0
        %402 = vmatprep.subr.mxu0 0.0
        %403 = vmatpush1.msra.mxu0 0.0
        %404 = vmatprep.subr.mxu0 0.0
        %405 = vmatpush1.msra.mxu0 0.0
        %406 = vmatprep.subr.mxu0 0.0
        %407 = vmatpush1.msra.mxu0 0.0
        %408 = vmatprep.subr.mxu0 0.0
        %409 = vmatpush1.msra.mxu0 0.0
        %410 = vmatprep.subr.mxu0 0.0
        %411 = vmatpush1.msra.mxu0 0.0
        %412 = vmatprep.subr.mxu0 0.0
        %413 = vmatpush1.msra.mxu0 0.0
        %414 = vmatprep.subr.mxu0 0.0
        %415 = vmatpush1.msra.mxu0 0.0
        %416 = vmatprep.subr.mxu0 0.0
        %417 = vmatpush1.msra.mxu0 0.0
        %418 = vmatprep.subr.mxu0 0.0
        %419 = vmatpush1.msra.mxu0 0.0
        %420 = vmatprep.subr.mxu0 0.0
        %421 = vmatpush1.msra.mxu0 0.0
        %422 = vmatprep.subr.mxu0 0.0
        %423 = vmatpush1.msra.mxu0 0.0
        %424 = vmatprep.subr.mxu0 0.0
        %425 = vmatpush1.msra.mxu0 0.0
        %426 = vmatprep.subr.mxu0 0.0
        %427 = vmatpush1.msra.mxu0 0.0
        %428 = vmatprep.mubr.f32.mxu0 0.0
        %429 = vmatmul.mubr.f32.gmra.mrb[0].mxu0 %v362
        %v430 = vpop.f32.mrb[0].mxu0
        %v431 = vadd.f32 0.0, %v430
        %v432 = vpop.f32.mrb[0].mxu0
        %v433 = vadd.f32 0.0, %v432
        %434 = vdwg.mxu0
        %v435 = vlaneseq
        %v436 = vshrl.u32 %v435, 7
        %v437 = vsub.s32 2, %v436
        %v438 = vrot.slane %v317, %v437
        %v439 = vadd.f32 %v431, %v438
        %v440 = vlaneseq
        %v441 = vshrl.u32 %v440, 7
        %v442 = vsub.s32 3, %v441
        %v443 = vrot.slane %v317, %v442
        %445 = vrot.lane.b32.xlu0 %v443, 32
        %v446 = vpop.permute.xlu0 %445
        %v448 = vadd.f32 %v431, %v446
        %450 = vrot.lane.b32.xlu0 %v448, 96
        %v451 = vpop.permute.xlu0 %450
        %vm452 = vcmask 64512
        %v454 = vsel %vm452, %v439, 0
        %v456 = vsel %vm452, %v451, 0
        %458 = vmatprep.subr.mxu0 0.0
        %459 = vmatpush1.xpose.msra.mxu0 %v456
        %460 = vmatprep.subr.mxu0 0.0
        %461 = vmatpush1.xpose.msra.mxu0 0.0
        %462 = vmatprep.subr.mxu0 0.0
        %463 = vmatpush1.xpose.msra.mxu0 0.0
        %464 = vmatprep.subr.mxu0 0.0
        %465 = vmatpush1.xpose.msra.mxu0 0.0
        %466 = vmatprep.subr.mxu0 0.0
        %467 = vmatpush1.xpose.msra.mxu0 0.0
        %468 = vmatprep.subr.mxu0 0.0
        %469 = vmatpush1.xpose.msra.mxu0 0.0
        %470 = vmatprep.subr.mxu0 0.0
        %471 = vmatpush1.xpose.msra.mxu0 0.0
        %472 = vmatprep.subr.mxu0 0.0
        %473 = vmatpush1.xpose.msra.mxu0 0.0
        %474 = vmatprep.subr.mxu0 0.0
        %475 = vmatpush1.xpose.msra.mxu0 0.0
        %476 = vmatprep.subr.mxu0 0.0
        %477 = vmatpush1.xpose.msra.mxu0 0.0
        %478 = vmatprep.subr.mxu0 0.0
        %479 = vmatpush1.xpose.msra.mxu0 0.0
        %480 = vmatprep.subr.mxu0 0.0
        %481 = vmatpush1.xpose.msra.mxu0 0.0
        %482 = vmatprep.subr.mxu0 0.0
        %483 = vmatpush1.xpose.msra.mxu0 0.0
        %484 = vmatprep.subr.mxu0 0.0
        %485 = vmatpush1.xpose.msra.mxu0 0.0
        %486 = vmatprep.subr.mxu0 0.0
        %487 = vmatpush1.xpose.msra.mxu0 0.0
        %488 = vmatprep.subr.mxu0 0.0
        %489 = vmatpush1.xpose.msra.mxu0 0.0
        %490 = vmatprep.subr.mxu0 0.0
        %491 = vmatpush1.xpose.msra.mxu0 0.0
        %492 = vmatprep.subr.mxu0 0.0
        %493 = vmatpush1.xpose.msra.mxu0 0.0
        %494 = vmatprep.subr.mxu0 0.0
        %495 = vmatpush1.xpose.msra.mxu0 0.0
        %496 = vmatprep.subr.mxu0 0.0
        %497 = vmatpush1.xpose.msra.mxu0 0.0
        %498 = vmatprep.subr.mxu0 0.0
        %499 = vmatpush1.xpose.msra.mxu0 0.0
        %500 = vmatprep.subr.mxu0 0.0
        %501 = vmatpush1.xpose.msra.mxu0 0.0
        %502 = vmatprep.subr.mxu0 0.0
        %503 = vmatpush1.xpose.msra.mxu0 0.0
        %504 = vmatprep.subr.mxu0 0.0
        %505 = vmatpush1.xpose.msra.mxu0 0.0
        %506 = vmatprep.subr.mxu0 0.0
        %507 = vmatpush1.xpose.msra.mxu0 0.0
        %508 = vmatprep.subr.mxu0 0.0
        %509 = vmatpush1.xpose.msra.mxu0 0.0
        %510 = vmatprep.subr.mxu0 0.0
        %511 = vmatpush1.xpose.msra.mxu0 0.0
        %512 = vmatprep.subr.mxu0 0.0
        %513 = vmatpush1.xpose.msra.mxu0 0.0
        %514 = vmatprep.subr.mxu0 0.0
        %515 = vmatpush1.xpose.msra.mxu0 0.0
        %516 = vmatprep.subr.mxu0 0.0
        %517 = vmatpush1.xpose.msra.mxu0 0.0
        %518 = vmatprep.subr.mxu0 0.0
        %519 = vmatpush1.xpose.msra.mxu0 0.0
        %520 = vmatprep.subr.mxu0 0.0
        %521 = vmatpush1.xpose.msra.mxu0 0.0
        %522 = vmatprep.mubr.f32.mxu0 0.0
        %523 = vmatmul.mubr.f32.gmra.mrb[0].mxu0 %v454
        %v524 = vpop.f32.mrb[0].mxu0
        %v525 = vadd.f32 0.0, %v524
        %v526 = vpop.f32.mrb[0].mxu0
        %527 = vdwg.mxu0
        %v528 = vmul.f32 %v525, 0.35355338
        %529 = vrot.lane.b32.xlu0 %v439, 120
        %v530 = vpop.permute.xlu0 %529
        %531 = vrot.lane.b32.xlu0 %v448, 88
        %v532 = vpop.permute.xlu0 %531
        %v533 = vsel %vm452, %v530, 0
        %v535 = vsel %vm452, %v532, 0
        %537 = vmatprep.subr.mxu0 0.0
        %538 = vmatpush1.xpose.msra.mxu0 %v535
        %539 = vmatprep.subr.mxu0 0.0
        %540 = vmatpush1.xpose.msra.mxu0 0.0
        %541 = vmatprep.subr.mxu0 0.0
        %542 = vmatpush1.xpose.msra.mxu0 0.0
        %543 = vmatprep.subr.mxu0 0.0
        %544 = vmatpush1.xpose.msra.mxu0 0.0
        %545 = vmatprep.subr.mxu0 0.0
        %546 = vmatpush1.xpose.msra.mxu0 0.0
        %547 = vmatprep.subr.mxu0 0.0
        %548 = vmatpush1.xpose.msra.mxu0 0.0
        %549 = vmatprep.subr.mxu0 0.0
        %550 = vmatpush1.xpose.msra.mxu0 0.0
        %551 = vmatprep.subr.mxu0 0.0
        %552 = vmatpush1.xpose.msra.mxu0 0.0
        %553 = vmatprep.subr.mxu0 0.0
        %554 = vmatpush1.xpose.msra.mxu0 0.0
        %555 = vmatprep.subr.mxu0 0.0
        %556 = vmatpush1.xpose.msra.mxu0 0.0
        %557 = vmatprep.subr.mxu0 0.0
        %558 = vmatpush1.xpose.msra.mxu0 0.0
        %559 = vmatprep.subr.mxu0 0.0
        %560 = vmatpush1.xpose.msra.mxu0 0.0
        %561 = vmatprep.subr.mxu0 0.0
        %562 = vmatpush1.xpose.msra.mxu0 0.0
        %563 = vmatprep.subr.mxu0 0.0
        %564 = vmatpush1.xpose.msra.mxu0 0.0
        %565 = vmatprep.subr.mxu0 0.0
        %566 = vmatpush1.xpose.msra.mxu0 0.0
        %567 = vmatprep.subr.mxu0 0.0
        %568 = vmatpush1.xpose.msra.mxu0 0.0
        %569 = vmatprep.subr.mxu0 0.0
        %570 = vmatpush1.xpose.msra.mxu0 0.0
        %571 = vmatprep.subr.mxu0 0.0
        %572 = vmatpush1.xpose.msra.mxu0 0.0
        %573 = vmatprep.subr.mxu0 0.0
        %574 = vmatpush1.xpose.msra.mxu0 0.0
        %575 = vmatprep.subr.mxu0 0.0
        %576 = vmatpush1.xpose.msra.mxu0 0.0
        %577 = vmatprep.subr.mxu0 0.0
        %578 = vmatpush1.xpose.msra.mxu0 0.0
        %579 = vmatprep.subr.mxu0 0.0
        %580 = vmatpush1.xpose.msra.mxu0 0.0
        %581 = vmatprep.subr.mxu0 0.0
        %582 = vmatpush1.xpose.msra.mxu0 0.0
        %583 = vmatprep.subr.mxu0 0.0
        %584 = vmatpush1.xpose.msra.mxu0 0.0
        %585 = vmatprep.subr.mxu0 0.0
        %586 = vmatpush1.xpose.msra.mxu0 0.0
        %587 = vmatprep.subr.mxu0 0.0
        %588 = vmatpush1.xpose.msra.mxu0 0.0
        %589 = vmatprep.subr.mxu0 0.0
        %590 = vmatpush1.xpose.msra.mxu0 0.0
        %591 = vmatprep.subr.mxu0 0.0
        %592 = vmatpush1.xpose.msra.mxu0 0.0
        %593 = vmatprep.subr.mxu0 0.0
        %594 = vmatpush1.xpose.msra.mxu0 0.0
        %595 = vmatprep.subr.mxu0 0.0
        %596 = vmatpush1.xpose.msra.mxu0 0.0
        %597 = vmatprep.subr.mxu0 0.0
        %598 = vmatpush1.xpose.msra.mxu0 0.0
        %599 = vmatprep.subr.mxu0 0.0
        %600 = vmatpush1.xpose.msra.mxu0 0.0
        %601 = vmatprep.mubr.f32.mxu0 0.0
        %602 = vmatmul.mubr.f32.gmra.mrb[0].mxu0 %v533
        %v603 = vpop.f32.mrb[0].mxu0
        %v604 = vadd.f32 0.0, %v603
        %v605 = vpop.f32.mrb[0].mxu0
        %606 = vdwg.mxu0
        %v607 = vmul.f32 %v604, 0.35355338
        %608 = vrot.lane.b32.xlu0 %v439, 112
        %v609 = vpop.permute.xlu0 %608
        %610 = vrot.lane.b32.xlu0 %v448, 80
        %v611 = vpop.permute.xlu0 %610
        %v612 = vsel %vm452, %v609, 0
        %v614 = vsel %vm452, %v611, 0
        %616 = vmatprep.subr.mxu0 0.0
        %617 = vmatpush1.xpose.msra.mxu0 %v614
        %618 = vmatprep.subr.mxu0 0.0
        %619 = vmatpush1.xpose.msra.mxu0 0.0
        %620 = vmatprep.subr.mxu0 0.0
        %621 = vmatpush1.xpose.msra.mxu0 0.0
        %622 = vmatprep.subr.mxu0 0.0
        %623 = vmatpush1.xpose.msra.mxu0 0.0
        %624 = vmatprep.subr.mxu0 0.0
        %625 = vmatpush1.xpose.msra.mxu0 0.0
        %626 = vmatprep.subr.mxu0 0.0
        %627 = vmatpush1.xpose.msra.mxu0 0.0
        %628 = vmatprep.subr.mxu0 0.0
        %629 = vmatpush1.xpose.msra.mxu0 0.0
        %630 = vmatprep.subr.mxu0 0.0
        %631 = vmatpush1.xpose.msra.mxu0 0.0
        %632 = vmatprep.subr.mxu0 0.0
        %633 = vmatpush1.xpose.msra.mxu0 0.0
        %634 = vmatprep.subr.mxu0 0.0
        %635 = vmatpush1.xpose.msra.mxu0 0.0
        %636 = vmatprep.subr.mxu0 0.0
        %637 = vmatpush1.xpose.msra.mxu0 0.0
        %638 = vmatprep.subr.mxu0 0.0
        %639 = vmatpush1.xpose.msra.mxu0 0.0
        %640 = vmatprep.subr.mxu0 0.0
        %641 = vmatpush1.xpose.msra.mxu0 0.0
        %642 = vmatprep.subr.mxu0 0.0
        %643 = vmatpush1.xpose.msra.mxu0 0.0
        %644 = vmatprep.subr.mxu0 0.0
        %645 = vmatpush1.xpose.msra.mxu0 0.0
        %646 = vmatprep.subr.mxu0 0.0
        %647 = vmatpush1.xpose.msra.mxu0 0.0
        %648 = vmatprep.subr.mxu0 0.0
        %649 = vmatpush1.xpose.msra.mxu0 0.0
        %650 = vmatprep.subr.mxu0 0.0
        %651 = vmatpush1.xpose.msra.mxu0 0.0
        %652 = vmatprep.subr.mxu0 0.0
        %653 = vmatpush1.xpose.msra.mxu0 0.0
        %654 = vmatprep.subr.mxu0 0.0
        %655 = vmatpush1.xpose.msra.mxu0 0.0
        %656 = vmatprep.subr.mxu0 0.0
        %657 = vmatpush1.xpose.msra.mxu0 0.0
        %658 = vmatprep.subr.mxu0 0.0
        %659 = vmatpush1.xpose.msra.mxu0 0.0
        %660 = vmatprep.subr.mxu0 0.0
        %661 = vmatpush1.xpose.msra.mxu0 0.0
        %662 = vmatprep.subr.mxu0 0.0
        %663 = vmatpush1.xpose.msra.mxu0 0.0
        %664 = vmatprep.subr.mxu0 0.0
        %665 = vmatpush1.xpose.msra.mxu0 0.0
        %666 = vmatprep.subr.mxu0 0.0
        %667 = vmatpush1.xpose.msra.mxu0 0.0
        %668 = vmatprep.subr.mxu0 0.0
        %669 = vmatpush1.xpose.msra.mxu0 0.0
        %670 = vmatprep.subr.mxu0 0.0
        %671 = vmatpush1.xpose.msra.mxu0 0.0
        %672 = vmatprep.subr.mxu0 0.0
        %673 = vmatpush1.xpose.msra.mxu0 0.0
        %674 = vmatprep.subr.mxu0 0.0
        %675 = vmatpush1.xpose.msra.mxu0 0.0
        %676 = vmatprep.subr.mxu0 0.0
        %677 = vmatpush1.xpose.msra.mxu0 0.0
        %678 = vmatprep.subr.mxu0 0.0
        %679 = vmatpush1.xpose.msra.mxu0 0.0
        %680 = vmatprep.mubr.f32.mxu0 0.0
        %681 = vmatmul.mubr.f32.gmra.mrb[0].mxu0 %v612
        %v682 = vpop.f32.mrb[0].mxu0
        %v683 = vadd.f32 0.0, %v682
        %v684 = vpop.f32.mrb[0].mxu0
        %685 = vdwg.mxu0
        %v686 = vmul.f32 %v683, 0.35355338
        %687 = vrot.lane.b32.xlu0 %v439, 104
        %v688 = vpop.permute.xlu0 %687
        %689 = vrot.lane.b32.xlu0 %v448, 72
        %v690 = vpop.permute.xlu0 %689
        %v691 = vsel %vm452, %v688, 0
        %v693 = vsel %vm452, %v690, 0
        %695 = vmatprep.subr.mxu0 0.0
        %696 = vmatpush1.xpose.msra.mxu0 %v693
        %697 = vmatprep.subr.mxu0 0.0
        %698 = vmatpush1.xpose.msra.mxu0 0.0
        %699 = vmatprep.subr.mxu0 0.0
        %700 = vmatpush1.xpose.msra.mxu0 0.0
        %701 = vmatprep.subr.mxu0 0.0
        %702 = vmatpush1.xpose.msra.mxu0 0.0
        %703 = vmatprep.subr.mxu0 0.0
        %704 = vmatpush1.xpose.msra.mxu0 0.0
        %705 = vmatprep.subr.mxu0 0.0
        %706 = vmatpush1.xpose.msra.mxu0 0.0
        %707 = vmatprep.subr.mxu0 0.0
        %708 = vmatpush1.xpose.msra.mxu0 0.0
        %709 = vmatprep.subr.mxu0 0.0
        %710 = vmatpush1.xpose.msra.mxu0 0.0
        %711 = vmatprep.subr.mxu0 0.0
        %712 = vmatpush1.xpose.msra.mxu0 0.0
        %713 = vmatprep.subr.mxu0 0.0
        %714 = vmatpush1.xpose.msra.mxu0 0.0
        %715 = vmatprep.subr.mxu0 0.0
        %716 = vmatpush1.xpose.msra.mxu0 0.0
        %717 = vmatprep.subr.mxu0 0.0
        %718 = vmatpush1.xpose.msra.mxu0 0.0
        %719 = vmatprep.subr.mxu0 0.0
        %720 = vmatpush1.xpose.msra.mxu0 0.0
        %721 = vmatprep.subr.mxu0 0.0
        %722 = vmatpush1.xpose.msra.mxu0 0.0
        %723 = vmatprep.subr.mxu0 0.0
        %724 = vmatpush1.xpose.msra.mxu0 0.0
        %725 = vmatprep.subr.mxu0 0.0
        %726 = vmatpush1.xpose.msra.mxu0 0.0
        %727 = vmatprep.subr.mxu0 0.0
        %728 = vmatpush1.xpose.msra.mxu0 0.0
        %729 = vmatprep.subr.mxu0 0.0
        %730 = vmatpush1.xpose.msra.mxu0 0.0
        %731 = vmatprep.subr.mxu0 0.0
        %732 = vmatpush1.xpose.msra.mxu0 0.0
        %733 = vmatprep.subr.mxu0 0.0
        %734 = vmatpush1.xpose.msra.mxu0 0.0
        %735 = vmatprep.subr.mxu0 0.0
        %736 = vmatpush1.xpose.msra.mxu0 0.0
        %737 = vmatprep.subr.mxu0 0.0
        %738 = vmatpush1.xpose.msra.mxu0 0.0
        %739 = vmatprep.subr.mxu0 0.0
        %740 = vmatpush1.xpose.msra.mxu0 0.0
        %741 = vmatprep.subr.mxu0 0.0
        %742 = vmatpush1.xpose.msra.mxu0 0.0
        %743 = vmatprep.subr.mxu0 0.0
        %744 = vmatpush1.xpose.msra.mxu0 0.0
        %745 = vmatprep.subr.mxu0 0.0
        %746 = vmatpush1.xpose.msra.mxu0 0.0
        %747 = vmatprep.subr.mxu0 0.0
        %748 = vmatpush1.xpose.msra.mxu0 0.0
        %749 = vmatprep.subr.mxu0 0.0
        %750 = vmatpush1.xpose.msra.mxu0 0.0
        %751 = vmatprep.subr.mxu0 0.0
        %752 = vmatpush1.xpose.msra.mxu0 0.0
        %753 = vmatprep.subr.mxu0 0.0
        %754 = vmatpush1.xpose.msra.mxu0 0.0
        %755 = vmatprep.subr.mxu0 0.0
        %756 = vmatpush1.xpose.msra.mxu0 0.0
        %757 = vmatprep.subr.mxu0 0.0
        %758 = vmatpush1.xpose.msra.mxu0 0.0
        %759 = vmatprep.mubr.f32.mxu0 0.0
        %760 = vmatmul.mubr.f32.gmra.mrb[0].mxu0 %v691
        %v761 = vpop.f32.mrb[0].mxu0
        %v762 = vadd.f32 0.0, %v761
        %v763 = vpop.f32.mrb[0].mxu0
        %764 = vdwg.mxu0
        %v765 = vmul.f32 %v762, 0.35355338
        %v766 = vsel %vm452, %v528, -inf
        %767 = vmax.xlane.f32.xlu0 %v766
        %v768 = vpop.xlane.xlu0 %767
        %v769 = vsel %vm452, %v607, -inf
        %770 = vmax.xlane.f32.xlu0 %v769
        %v771 = vpop.xlane.xlu0 %770
        %v772 = vsel %vm452, %v686, -inf
        %773 = vmax.xlane.f32.xlu0 %v772
        %v774 = vpop.xlane.xlu0 %773
        %v775 = vsel %vm452, %v765, -inf
        %776 = vmax.xlane.f32.xlu0 %v775
        %v777 = vpop.xlane.xlu0 %776
        %v778 = vsub.f32 %v528, %v768
        %v779 = vsub.f32 %v607, %v771
        %v780 = vsub.f32 %v686, %v774
        %v781 = vsub.f32 %v765, %v777
        %v782 = vmul.f32 %v778, 1.442695
        %v783 = vpow.pop %v782
        %v784 = vmul.f32 %v779, 1.442695
        %v785 = vpow.pop %v784
        %v786 = vmul.f32 %v780, 1.442695
        %v787 = vpow.pop %v786
        %v788 = vmul.f32 %v781, 1.442695
        %v789 = vpow.pop %v788
        %v790 = vsel %vm452, %v783, 0.0
        %791 = vadd.xlane.f32.xlu0 %v790
        %v792 = vpop.xlane.xlu0 %791
        %v793 = vsel %vm452, %v785, 0.0
        %794 = vadd.xlane.f32.xlu0 %v793
        %v795 = vpop.xlane.xlu0 %794
        %v796 = vsel %vm452, %v787, 0.0
        %797 = vadd.xlane.f32.xlu0 %v796
        %v798 = vpop.xlane.xlu0 %797
        %v799 = vsel %vm452, %v789, 0.0
        %800 = vadd.xlane.f32.xlu0 %v799
        %v801 = vpop.xlane.xlu0 %800
        %v802 = vrcp.pop %v792
        %v803 = vmul.f32 %v783, %v802
        %v804 = vrcp.pop %v795
        %v805 = vmul.f32 %v785, %v804
        %v806 = vrcp.pop %v798
        %v807 = vmul.f32 %v787, %v806
        %v808 = vrcp.pop %v801
        %v809 = vmul.f32 %v789, %v808
        %v810 = vlaneseq
        %v811 = vshrl.u32 %v810, 7
        %v812 = vsub.s32 4, %v811
        %v813 = vrot.slane %v317, %v812
        %815 = vrot.lane.b32.xlu0 %v431, 64
        %v816 = vpop.permute.xlu0 %815
        %v819 = vsel %vm452, %v803, 0
        %821 = vmatprep.subr.mxu0 0.0
        %822 = vmatpush1.msra.mxu0 %v816
        %823 = vmatprep.subr.mxu0 0.0
        %824 = vmatpush1.msra.mxu0 0.0
        %825 = vmatprep.subr.mxu0 0.0
        %826 = vmatpush1.msra.mxu0 0.0
        %827 = vmatprep.subr.mxu0 0.0
        %828 = vmatpush1.msra.mxu0 0.0
        %829 = vmatprep.subr.mxu0 0.0
        %830 = vmatpush1.msra.mxu0 0.0
        %831 = vmatprep.subr.mxu0 0.0
        %832 = vmatpush1.msra.mxu0 0.0
        %833 = vmatprep.subr.mxu0 0.0
        %834 = vmatpush1.msra.mxu0 0.0
        %835 = vmatprep.subr.mxu0 0.0
        %836 = vmatpush1.msra.mxu0 0.0
        %837 = vmatprep.subr.mxu0 0.0
        %838 = vmatpush1.msra.mxu0 0.0
        %839 = vmatprep.subr.mxu0 0.0
        %840 = vmatpush1.msra.mxu0 0.0
        %841 = vmatprep.subr.mxu0 0.0
        %842 = vmatpush1.msra.mxu0 0.0
        %843 = vmatprep.subr.mxu0 0.0
        %844 = vmatpush1.msra.mxu0 0.0
        %845 = vmatprep.subr.mxu0 0.0
        %846 = vmatpush1.msra.mxu0 0.0
        %847 = vmatprep.subr.mxu0 0.0
        %848 = vmatpush1.msra.mxu0 0.0
        %849 = vmatprep.subr.mxu0 0.0
        %850 = vmatpush1.msra.mxu0 0.0
        %851 = vmatprep.subr.mxu0 0.0
        %852 = vmatpush1.msra.mxu0 0.0
        %853 = vmatprep.subr.mxu0 0.0
        %854 = vmatpush1.msra.mxu0 0.0
        %855 = vmatprep.subr.mxu0 0.0
        %856 = vmatpush1.msra.mxu0 0.0
        %857 = vmatprep.subr.mxu0 0.0
        %858 = vmatpush1.msra.mxu0 0.0
        %859 = vmatprep.subr.mxu0 0.0
        %860 = vmatpush1.msra.mxu0 0.0
        %861 = vmatprep.subr.mxu0 0.0
        %862 = vmatpush1.msra.mxu0 0.0
        %863 = vmatprep.subr.mxu0 0.0
        %864 = vmatpush1.msra.mxu0 0.0
        %865 = vmatprep.subr.mxu0 0.0
        %866 = vmatpush1.msra.mxu0 0.0
        %867 = vmatprep.subr.mxu0 0.0
        %868 = vmatpush1.msra.mxu0 0.0
        %869 = vmatprep.subr.mxu0 0.0
        %870 = vmatpush1.msra.mxu0 0.0
        %871 = vmatprep.subr.mxu0 0.0
        %872 = vmatpush1.msra.mxu0 0.0
        %873 = vmatprep.subr.mxu0 0.0
        %874 = vmatpush1.msra.mxu0 0.0
        %875 = vmatprep.subr.mxu0 0.0
        %876 = vmatpush1.msra.mxu0 0.0
        %877 = vmatprep.subr.mxu0 0.0
        %878 = vmatpush1.msra.mxu0 0.0
        %879 = vmatprep.subr.mxu0 0.0
        %880 = vmatpush1.msra.mxu0 0.0
        %881 = vmatprep.subr.mxu0 0.0
        %882 = vmatpush1.msra.mxu0 0.0
        %883 = vmatprep.subr.mxu0 0.0
        %884 = vmatpush1.msra.mxu0 0.0
        %885 = vmatprep.mubr.f32.mxu0 0.0
        %886 = vmatmul.mubr.f32.gmra.mrb[0].mxu0 %v819
        %v887 = vpop.f32.mrb[0].mxu0
        %v888 = vadd.f32 0.0, %v887
        %v889 = vpop.f32.mrb[0].mxu0
        %890 = vdwg.mxu0
        %v891 = vadd.f32 %v813, %v888
        %892 = vrot.lane.b32.xlu0 %v431, 32
        %v893 = vpop.permute.xlu0 %892
        %v896 = vsel %vm452, %v805, 0
        %898 = vmatprep.subr.mxu0 0.0
        %899 = vmatpush1.msra.mxu0 %v893
        %900 = vmatprep.subr.mxu0 0.0
        %901 = vmatpush1.msra.mxu0 0.0
        %902 = vmatprep.subr.mxu0 0.0
        %903 = vmatpush1.msra.mxu0 0.0
        %904 = vmatprep.subr.mxu0 0.0
        %905 = vmatpush1.msra.mxu0 0.0
        %906 = vmatprep.subr.mxu0 0.0
        %907 = vmatpush1.msra.mxu0 0.0
        %908 = vmatprep.subr.mxu0 0.0
        %909 = vmatpush1.msra.mxu0 0.0
        %910 = vmatprep.subr.mxu0 0.0
        %911 = vmatpush1.msra.mxu0 0.0
        %912 = vmatprep.subr.mxu0 0.0
        %913 = vmatpush1.msra.mxu0 0.0
        %914 = vmatprep.subr.mxu0 0.0
        %915 = vmatpush1.msra.mxu0 0.0
        %916 = vmatprep.subr.mxu0 0.0
        %917 = vmatpush1.msra.mxu0 0.0
        %918 = vmatprep.subr.mxu0 0.0
        %919 = vmatpush1.msra.mxu0 0.0
        %920 = vmatprep.subr.mxu0 0.0
        %921 = vmatpush1.msra.mxu0 0.0
        %922 = vmatprep.subr.mxu0 0.0
        %923 = vmatpush1.msra.mxu0 0.0
        %924 = vmatprep.subr.mxu0 0.0
        %925 = vmatpush1.msra.mxu0 0.0
        %926 = vmatprep.subr.mxu0 0.0
        %927 = vmatpush1.msra.mxu0 0.0
        %928 = vmatprep.subr.mxu0 0.0
        %929 = vmatpush1.msra.mxu0 0.0
        %930 = vmatprep.subr.mxu0 0.0
        %931 = vmatpush1.msra.mxu0 0.0
        %932 = vmatprep.subr.mxu0 0.0
        %933 = vmatpush1.msra.mxu0 0.0
        %934 = vmatprep.subr.mxu0 0.0
        %935 = vmatpush1.msra.mxu0 0.0
        %936 = vmatprep.subr.mxu0 0.0
        %937 = vmatpush1.msra.mxu0 0.0
        %938 = vmatprep.subr.mxu0 0.0
        %939 = vmatpush1.msra.mxu0 0.0
        %940 = vmatprep.subr.mxu0 0.0
        %941 = vmatpush1.msra.mxu0 0.0
        %942 = vmatprep.subr.mxu0 0.0
        %943 = vmatpush1.msra.mxu0 0.0
        %944 = vmatprep.subr.mxu0 0.0
        %945 = vmatpush1.msra.mxu0 0.0
        %946 = vmatprep.subr.mxu0 0.0
        %947 = vmatpush1.msra.mxu0 0.0
        %948 = vmatprep.subr.mxu0 0.0
        %949 = vmatpush1.msra.mxu0 0.0
        %950 = vmatprep.subr.mxu0 0.0
        %951 = vmatpush1.msra.mxu0 0.0
        %952 = vmatprep.subr.mxu0 0.0
        %953 = vmatpush1.msra.mxu0 0.0
        %954 = vmatprep.subr.mxu0 0.0
        %955 = vmatpush1.msra.mxu0 0.0
        %956 = vmatprep.subr.mxu0 0.0
        %957 = vmatpush1.msra.mxu0 0.0
        %958 = vmatprep.subr.mxu0 0.0
        %959 = vmatpush1.msra.mxu0 0.0
        %960 = vmatprep.subr.mxu0 0.0
        %961 = vmatpush1.msra.mxu0 0.0
        %962 = vmatprep.mubr.f32.mxu0 0.0
        %963 = vmatmul.mubr.f32.gmra.mrb[0].mxu0 %v896
        %v964 = vpop.f32.mrb[0].mxu0
        %v965 = vadd.f32 0.0, %v964
        %v966 = vpop.f32.mrb[0].mxu0
        %967 = vdwg.mxu0
        %v968 = vadd.f32 %v891, %v965
        %v970 = vsel %vm452, %v807, 0
        %972 = vmatprep.subr.mxu0 0.0
        %973 = vmatpush1.msra.mxu0 %v433
        %974 = vmatprep.subr.mxu0 0.0
        %975 = vmatpush1.msra.mxu0 0.0
        %976 = vmatprep.subr.mxu0 0.0
        %977 = vmatpush1.msra.mxu0 0.0
        %978 = vmatprep.subr.mxu0 0.0
        %979 = vmatpush1.msra.mxu0 0.0
        %980 = vmatprep.subr.mxu0 0.0
        %981 = vmatpush1.msra.mxu0 0.0
        %982 = vmatprep.subr.mxu0 0.0
        %983 = vmatpush1.msra.mxu0 0.0
        %984 = vmatprep.subr.mxu0 0.0
        %985 = vmatpush1.msra.mxu0 0.0
        %986 = vmatprep.subr.mxu0 0.0
        %987 = vmatpush1.msra.mxu0 0.0
        %988 = vmatprep.subr.mxu0 0.0
        %989 = vmatpush1.msra.mxu0 0.0
        %990 = vmatprep.subr.mxu0 0.0
        %991 = vmatpush1.msra.mxu0 0.0
        %992 = vmatprep.subr.mxu0 0.0
        %993 = vmatpush1.msra.mxu0 0.0
        %994 = vmatprep.subr.mxu0 0.0
        %995 = vmatpush1.msra.mxu0 0.0
        %996 = vmatprep.subr.mxu0 0.0
        %997 = vmatpush1.msra.mxu0 0.0
        %998 = vmatprep.subr.mxu0 0.0
        %999 = vmatpush1.msra.mxu0 0.0
        %1000 = vmatprep.subr.mxu0 0.0
        %1001 = vmatpush1.msra.mxu0 0.0
        %1002 = vmatprep.subr.mxu0 0.0
        %1003 = vmatpush1.msra.mxu0 0.0
        %1004 = vmatprep.subr.mxu0 0.0
        %1005 = vmatpush1.msra.mxu0 0.0
        %1006 = vmatprep.subr.mxu0 0.0
        %1007 = vmatpush1.msra.mxu0 0.0
        %1008 = vmatprep.subr.mxu0 0.0
        %1009 = vmatpush1.msra.mxu0 0.0
        %1010 = vmatprep.subr.mxu0 0.0
        %1011 = vmatpush1.msra.mxu0 0.0
        %1012 = vmatprep.subr.mxu0 0.0
        %1013 = vmatpush1.msra.mxu0 0.0
        %1014 = vmatprep.subr.mxu0 0.0
        %1015 = vmatpush1.msra.mxu0 0.0
        %1016 = vmatprep.subr.mxu0 0.0
        %1017 = vmatpush1.msra.mxu0 0.0
        %1018 = vmatprep.subr.mxu0 0.0
        %1019 = vmatpush1.msra.mxu0 0.0
        %1020 = vmatprep.subr.mxu0 0.0
        %1021 = vmatpush1.msra.mxu0 0.0
        %1022 = vmatprep.subr.mxu0 0.0
        %1023 = vmatpush1.msra.mxu0 0.0
        %1024 = vmatprep.subr.mxu0 0.0
        %1025 = vmatpush1.msra.mxu0 0.0
        %1026 = vmatprep.subr.mxu0 0.0
        %1027 = vmatpush1.msra.mxu0 0.0
        %1028 = vmatprep.subr.mxu0 0.0
        %1029 = vmatpush1.msra.mxu0 0.0
        %1030 = vmatprep.subr.mxu0 0.0
        %1031 = vmatpush1.msra.mxu0 0.0
        %1032 = vmatprep.subr.mxu0 0.0
        %1033 = vmatpush1.msra.mxu0 0.0
        %1034 = vmatprep.subr.mxu0 0.0
        %1035 = vmatpush1.msra.mxu0 0.0
        %1036 = vmatprep.mubr.f32.mxu0 0.0
        %1037 = vmatmul.mubr.f32.gmra.mrb[0].mxu0 %v970
        %v1038 = vpop.f32.mrb[0].mxu0
        %v1039 = vadd.f32 0.0, %v1038
        %v1040 = vpop.f32.mrb[0].mxu0
        %1041 = vdwg.mxu0
        %v1042 = vadd.f32 %v968, %v1039
        %1044 = vrot.lane.b32.xlu0 %v433, 96
        %v1045 = vpop.permute.xlu0 %1044
        %v1048 = vsel %vm452, %v809, 0
        %1050 = vmatprep.subr.mxu0 0.0
        %1051 = vmatpush1.msra.mxu0 %v1045
        %1052 = vmatprep.subr.mxu0 0.0
        %1053 = vmatpush1.msra.mxu0 0.0
        %1054 = vmatprep.subr.mxu0 0.0
        %1055 = vmatpush1.msra.mxu0 0.0
        %1056 = vmatprep.subr.mxu0 0.0
        %1057 = vmatpush1.msra.mxu0 0.0
        %1058 = vmatprep.subr.mxu0 0.0
        %1059 = vmatpush1.msra.mxu0 0.0
        %1060 = vmatprep.subr.mxu0 0.0
        %1061 = vmatpush1.msra.mxu0 0.0
        %1062 = vmatprep.subr.mxu0 0.0
        %1063 = vmatpush1.msra.mxu0 0.0
        %1064 = vmatprep.subr.mxu0 0.0
        %1065 = vmatpush1.msra.mxu0 0.0
        %1066 = vmatprep.subr.mxu0 0.0
        %1067 = vmatpush1.msra.mxu0 0.0
        %1068 = vmatprep.subr.mxu0 0.0
        %1069 = vmatpush1.msra.mxu0 0.0
        %1070 = vmatprep.subr.mxu0 0.0
        %1071 = vmatpush1.msra.mxu0 0.0
        %1072 = vmatprep.subr.mxu0 0.0
        %1073 = vmatpush1.msra.mxu0 0.0
        %1074 = vmatprep.subr.mxu0 0.0
        %1075 = vmatpush1.msra.mxu0 0.0
        %1076 = vmatprep.subr.mxu0 0.0
        %1077 = vmatpush1.msra.mxu0 0.0
        %1078 = vmatprep.subr.mxu0 0.0
        %1079 = vmatpush1.msra.mxu0 0.0
        %1080 = vmatprep.subr.mxu0 0.0
        %1081 = vmatpush1.msra.mxu0 0.0
        %1082 = vmatprep.subr.mxu0 0.0
        %1083 = vmatpush1.msra.mxu0 0.0
        %1084 = vmatprep.subr.mxu0 0.0
        %1085 = vmatpush1.msra.mxu0 0.0
        %1086 = vmatprep.subr.mxu0 0.0
        %1087 = vmatpush1.msra.mxu0 0.0
        %1088 = vmatprep.subr.mxu0 0.0
        %1089 = vmatpush1.msra.mxu0 0.0
        %1090 = vmatprep.subr.mxu0 0.0
        %1091 = vmatpush1.msra.mxu0 0.0
        %1092 = vmatprep.subr.mxu0 0.0
        %1093 = vmatpush1.msra.mxu0 0.0
        %1094 = vmatprep.subr.mxu0 0.0
        %1095 = vmatpush1.msra.mxu0 0.0
        %1096 = vmatprep.subr.mxu0 0.0
        %1097 = vmatpush1.msra.mxu0 0.0
        %1098 = vmatprep.subr.mxu0 0.0
        %1099 = vmatpush1.msra.mxu0 0.0
        %1100 = vmatprep.subr.mxu0 0.0
        %1101 = vmatpush1.msra.mxu0 0.0
        %1102 = vmatprep.subr.mxu0 0.0
        %1103 = vmatpush1.msra.mxu0 0.0
        %1104 = vmatprep.subr.mxu0 0.0
        %1105 = vmatpush1.msra.mxu0 0.0
        %1106 = vmatprep.subr.mxu0 0.0
        %1107 = vmatpush1.msra.mxu0 0.0
        %1108 = vmatprep.subr.mxu0 0.0
        %1109 = vmatpush1.msra.mxu0 0.0
        %1110 = vmatprep.subr.mxu0 0.0
        %1111 = vmatpush1.msra.mxu0 0.0
        %1112 = vmatprep.subr.mxu0 0.0
        %1113 = vmatpush1.msra.mxu0 0.0
        %1114 = vmatprep.mubr.f32.mxu0 0.0
        %1115 = vmatmul.mubr.f32.gmra.mrb[0].mxu0 %v1048
        %v1116 = vpop.f32.mrb[0].mxu0
        %v1117 = vadd.f32 0.0, %v1116
        %v1118 = vpop.f32.mrb[0].mxu0
        %1119 = vdwg.mxu0
        %v1120 = vadd.f32 %v1042, %v1117
        %v1121 = vsel %vm328, %v1120, 0.0
        %1122 = vadd.xlane.f32.xlu0 %v1121
        %v1123 = vpop.xlane.xlu0 %1122
        %v1124 = vmul.f32 %v1123, %v332
        %v1125 = vsub.f32 %v1120, %v1124
        %v1126 = vmul.f32 %v1125, %v1125
        %v1127 = vsel %vm328, %v1126, 0.0
        %1128 = vadd.xlane.f32.xlu0 %v1127
        %v1129 = vpop.xlane.xlu0 %1128
        %v1130 = vmul.f32 %v1129, %v332
        %v1131 = vadd.f32 %v1130, 1e-05
        %v1132 = vrsqrt.pop %v1131
        %v1133 = vmul.f32 %v1125, %v1132
        %v1134 = vlaneseq
        %v1135 = vshrl.u32 %v1134, 7
        %v1136 = vsub.s32 5, %v1135
        %v1137 = vrot.slane %v317, %v1136
        %v1138 = vmul.f32 %v1133, %v1137
        %v1139 = vlaneseq
        %v1140 = vshrl.u32 %v1139, 7
        %v1141 = vsub.s32 6, %v1140
        %v1142 = vrot.slane %v317, %v1141
        %v1143 = vadd.f32 %v1138, %v1142
        %v1144 = vlaneseq
        %v1145 = vshrl.u32 %v1144, 7
        %v1146 = vsub.s32 7, %v1145
        %v1147 = vrot.slane %v317, %v1146
        %v1149 = vsel %vm328, %v1143, 0
        %1151 = vmatprep.subr.mxu0 0.0
        %1152 = vmatpush1.msra.mxu0 %v319
        %1153 = vmatprep.subr.mxu0 0.0
        %1154 = vmatpush1.msra.mxu0 %v320
        %1155 = vmatprep.subr.mxu0 0.0
        %1156 = vmatpush1.msra.mxu0 %v321
        %1157 = vmatprep.subr.mxu0 0.0
        %1158 = vmatpush1.msra.mxu0 %v322
        %1159 = vmatprep.subr.mxu0 0.0
        %1160 = vmatpush1.msra.mxu0 0.0
        %1161 = vmatprep.subr.mxu0 0.0
        %1162 = vmatpush1.msra.mxu0 0.0
        %1163 = vmatprep.subr.mxu0 0.0
        %1164 = vmatpush1.msra.mxu0 0.0
        %1165 = vmatprep.subr.mxu0 0.0
        %1166 = vmatpush1.msra.mxu0 0.0
        %1167 = vmatprep.subr.mxu0 0.0
        %1168 = vmatpush1.msra.mxu0 0.0
        %1169 = vmatprep.subr.mxu0 0.0
        %1170 = vmatpush1.msra.mxu0 0.0
        %1171 = vmatprep.subr.mxu0 0.0
        %1172 = vmatpush1.msra.mxu0 0.0
        %1173 = vmatprep.subr.mxu0 0.0
        %1174 = vmatpush1.msra.mxu0 0.0
        %1175 = vmatprep.subr.mxu0 0.0
        %1176 = vmatpush1.msra.mxu0 0.0
        %1177 = vmatprep.subr.mxu0 0.0
        %1178 = vmatpush1.msra.mxu0 0.0
        %1179 = vmatprep.subr.mxu0 0.0
        %1180 = vmatpush1.msra.mxu0 0.0
        %1181 = vmatprep.subr.mxu0 0.0
        %1182 = vmatpush1.msra.mxu0 0.0
        %1183 = vmatprep.subr.mxu0 0.0
        %1184 = vmatpush1.msra.mxu0 0.0
        %1185 = vmatprep.subr.mxu0 0.0
        %1186 = vmatpush1.msra.mxu0 0.0
        %1187 = vmatprep.subr.mxu0 0.0
        %1188 = vmatpush1.msra.mxu0 0.0
        %1189 = vmatprep.subr.mxu0 0.0
        %1190 = vmatpush1.msra.mxu0 0.0
        %1191 = vmatprep.subr.mxu0 0.0
        %1192 = vmatpush1.msra.mxu0 0.0
        %1193 = vmatprep.subr.mxu0 0.0
        %1194 = vmatpush1.msra.mxu0 0.0
        %1195 = vmatprep.subr.mxu0 0.0
        %1196 = vmatpush1.msra.mxu0 0.0
        %1197 = vmatprep.subr.mxu0 0.0
        %1198 = vmatpush1.msra.mxu0 0.0
        %1199 = vmatprep.subr.mxu0 0.0
        %1200 = vmatpush1.msra.mxu0 0.0
        %1201 = vmatprep.subr.mxu0 0.0
        %1202 = vmatpush1.msra.mxu0 0.0
        %1203 = vmatprep.subr.mxu0 0.0
        %1204 = vmatpush1.msra.mxu0 0.0
        %1205 = vmatprep.subr.mxu0 0.0
        %1206 = vmatpush1.msra.mxu0 0.0
        %1207 = vmatprep.subr.mxu0 0.0
        %1208 = vmatpush1.msra.mxu0 0.0
        %1209 = vmatprep.subr.mxu0 0.0
        %1210 = vmatpush1.msra.mxu0 0.0
        %1211 = vmatprep.subr.mxu0 0.0
        %1212 = vmatpush1.msra.mxu0 0.0
        %1213 = vmatprep.subr.mxu0 0.0
        %1214 = vmatpush1.msra.mxu0 0.0
        %1215 = vmatprep.mubr.f32.mxu0 0.0
        %1216 = vmatmul.mubr.f32.gmra.mrb[0].mxu0 %v1149
        %v1217 = vpop.f32.mrb[0].mxu0
        %v1218 = vadd.f32 %v1147, %v1217
        %v1219 = vpop.f32.mrb[0].mxu0
        %1220 = vdwg.mxu0
        %vm1221 = vcmp.ge.f32.partialorder %v1218, 0.0
        %v1222 = vmul.f32 %v1218, 0.2
        %v1223 = vsel %vm1221, %v1218, %v1222
        %v1224 = vlaneseq
        %v1225 = vshrl.u32 %v1224, 7
        %v1226 = vsub.s32 0, %v1225
        %v1227 = vrot.slane %v318, %v1226
        %v1229 = vsel %vm328, %v1223, 0
        %1231 = vmatprep.subr.mxu0 0.0
        %1232 = vmatpush1.msra.mxu0 %v324
        %1233 = vmatprep.subr.mxu0 0.0
        %1234 = vmatpush1.msra.mxu0 %v325
        %1235 = vmatprep.subr.mxu0 0.0
        %1236 = vmatpush1.msra.mxu0 %v326
        %1237 = vmatprep.subr.mxu0 0.0
        %1238 = vmatpush1.msra.mxu0 %v327
        %1239 = vmatprep.subr.mxu0 0.0
        %1240 = vmatpush1.msra.mxu0 0.0
        %1241 = vmatprep.subr.mxu0 0.0
        %1242 = vmatpush1.msra.mxu0 0.0
        %1243 = vmatprep.subr.mxu0 0.0
        %1244 = vmatpush1.msra.mxu0 0.0
        %1245 = vmatprep.subr.mxu0 0.0
        %1246 = vmatpush1.msra.mxu0 0.0
        %1247 = vmatprep.subr.mxu0 0.0
        %1248 = vmatpush1.msra.mxu0 0.0
        %1249 = vmatprep.subr.mxu0 0.0
        %1250 = vmatpush1.msra.mxu0 0.0
        %1251 = vmatprep.subr.mxu0 0.0
        %1252 = vmatpush1.msra.mxu0 0.0
        %1253 = vmatprep.subr.mxu0 0.0
        %1254 = vmatpush1.msra.mxu0 0.0
        %1255 = vmatprep.subr.mxu0 0.0
        %1256 = vmatpush1.msra.mxu0 0.0
        %1257 = vmatprep.subr.mxu0 0.0
        %1258 = vmatpush1.msra.mxu0 0.0
        %1259 = vmatprep.subr.mxu0 0.0
        %1260 = vmatpush1.msra.mxu0 0.0
        %1261 = vmatprep.subr.mxu0 0.0
        %1262 = vmatpush1.msra.mxu0 0.0
        %1263 = vmatprep.subr.mxu0 0.0
        %1264 = vmatpush1.msra.mxu0 0.0
        %1265 = vmatprep.subr.mxu0 0.0
        %1266 = vmatpush1.msra.mxu0 0.0
        %1267 = vmatprep.subr.mxu0 0.0
        %1268 = vmatpush1.msra.mxu0 0.0
        %1269 = vmatprep.subr.mxu0 0.0
        %1270 = vmatpush1.msra.mxu0 0.0
        %1271 = vmatprep.subr.mxu0 0.0
        %1272 = vmatpush1.msra.mxu0 0.0
        %1273 = vmatprep.subr.mxu0 0.0
        %1274 = vmatpush1.msra.mxu0 0.0
        %1275 = vmatprep.subr.mxu0 0.0
        %1276 = vmatpush1.msra.mxu0 0.0
        %1277 = vmatprep.subr.mxu0 0.0
        %1278 = vmatpush1.msra.mxu0 0.0
        %1279 = vmatprep.subr.mxu0 0.0
        %1280 = vmatpush1.msra.mxu0 0.0
        %1281 = vmatprep.subr.mxu0 0.0
        %1282 = vmatpush1.msra.mxu0 0.0
        %1283 = vmatprep.subr.mxu0 0.0
        %1284 = vmatpush1.msra.mxu0 0.0
        %1285 = vmatprep.subr.mxu0 0.0
        %1286 = vmatpush1.msra.mxu0 0.0
        %1287 = vmatprep.subr.mxu0 0.0
        %1288 = vmatpush1.msra.mxu0 0.0
        %1289 = vmatprep.subr.mxu0 0.0
        %1290 = vmatpush1.msra.mxu0 0.0
        %1291 = vmatprep.subr.mxu0 0.0
        %1292 = vmatpush1.msra.mxu0 0.0
        %1293 = vmatprep.subr.mxu0 0.0
        %1294 = vmatpush1.msra.mxu0 0.0
        %1295 = vmatprep.mubr.f32.mxu0 0.0
        %1296 = vmatmul.mubr.f32.gmra.mrb[0].mxu0 %v1229
        %v1297 = vpop.f32.mrb[0].mxu0
        %v1298 = vadd.f32 %v1227, %v1297
        %v1299 = vpop.f32.mrb[0].mxu0
        %1300 = vdwg.mxu0
        %vm1301 = vcmp.ge.f32.partialorder %v1298, 0.0
        %v1302 = vmul.f32 %v1298, 0.2
        %v1303 = vsel %vm1301, %v1298, %v1302
        %v1305 = vrot.slane %v1303, 1
        %1306 = vrot.lane.b32.xlu0 %v1305, 32
        %v1307 = vpop.permute.xlu0 %1306
        %v1309 = vrot.slane %v1303, 2
        %1310 = vrot.lane.b32.xlu0 %v1309, 64
        %v1311 = vpop.permute.xlu0 %1310
        %v1313 = vrot.slane %v1303, 3
        %1314 = vrot.lane.b32.xlu0 %v1313, 96
        %v1315 = vpop.permute.xlu0 %1314
        %v1317 = vrot.slane %v1303, 4
        %v1319 = vrot.slane %v1303, 5
        %1320 = vrot.lane.b32.xlu0 %v1319, 32
        %v1321 = vpop.permute.xlu0 %1320
        %v1323 = vrot.slane %v1303, 6
        %1324 = vrot.lane.b32.xlu0 %v1323, 64
        %v1325 = vpop.permute.xlu0 %1324
        %v1327 = vrot.slane %v1303, 7
        %1328 = vrot.lane.b32.xlu0 %v1327, 96
        %v1329 = vpop.permute.xlu0 %1328
        %v1331 = vsel %vm328, %v1303, %v1307
        %vm1332 = vcmask 523264
        %v1333 = vsel %vm1332, %v1331, %v1311
        %vm1334 = vcmask 785408
        %v1335 = vsel %vm1334, %v1333, %v1315
        %v1336 = vsel %vm328, %v1317, %v1321
        %v1337 = vsel %vm1332, %v1336, %v1325
        %v1338 = vsel %vm1334, %v1337, %v1329
        %v1341 = vcombine.low %v1335, %v1338
        %v1343 = vunpack.c.l.s4 1966171168
        %v1344 = vunpack.c.0.s8 %v1343
        %v1345 = vlaneseq
        %v1346 = vshrl.u32 %v1345, 7
        %v1347 = vsub.s32 %v1344, %v1346
        %v1348 = vrot.slane %v1341, %v1347
        %v1350 = vunpack.c.l.s4 1966171168
        %v1351 = vunpack.c.0.s8 %v1350
        %v1352 = vlaneseq
        %v1353 = vshrl.u32 %v1352, 7
        %v1354 = vsub.s32 %v1351, %v1353
        %v1355 = vrot.slane %v1348, %v1354
        %v1357 = vlaneseq
        %vm1358 = vcmp.ge.s32.totalorder %v1357, 0
        %vm1359 = vcmp.lt.s32.totalorder %v1357, 256
        %vm1360 = vmand %vm1358, %vm1359
        %1361 = vst.msk [vmem:[%s257] sm:$0x3] %vm1360, %v1355
        %s1362 = sand.u32 %s120, 1
        %s1363 = scalar_lea.sflag [#allocation4], %s1362
        %s1364 = sand.u32 %s120, 1
        %s1365 = smul.addr %s1364, 2
        %s1366 = scalar_lea.vmem [#allocation10], %s1365
        // Predicated region
        $region53: #{tpu_custom_call.1} parent=35 // pred_check
          %p1367 = pneg %p130
        $region54: #{tpu_custom_call.1} parent=35 // pred_check_branch
          %1369 = sbr.rel (%p1367) target = $region56
        $region55: #{tpu_custom_call.1} parent=35 // pred_region
          %s1371 = ssub.s32 32, 32
          %1372 = vsyncadd %s1363, %s1371
          %s1373 = smul.addr %s23, 2
          %s1374 = smul.addr %s1373, 16
          %s1375 = scalar_lea.hbm %s4, %s1374
          %s1377 = sshll.u32 %s1366, 4
          %s1378 = int_to_ptr.vmem [resolvable:$true] %s1377
          %1380 = dma.vmem_to_hbm [thread:$0]  %s1378, 32, %s1375, %s1363
        $region56: #{tpu_custom_call.1} parent=35 // pred_fallthru
          _
      $region36: #{tpu_custom_call.1} parent=5 // pred_fallthru
        _
      %p1381 = scmp.le.s32.totalorder 2, %s18
      // Predicated region
      $region57: #{tpu_custom_call.1} parent=5 // pred_check
        %p1382 = pneg %p1381
      $region58: #{tpu_custom_call.1} parent=5 // pred_check_branch
        %1384 = sbr.rel (%p1382) target = $region60
      $region59: #{tpu_custom_call.1} parent=5 // pred_region
        %s1385 = ssub.s32 %s18, 2
        // Predicated region
        $region61: #{tpu_custom_call.1} parent=59 // pred_check
          %p1386 = pneg %p136
        $region62: #{tpu_custom_call.1} parent=59 // pred_check_branch
          %1388 = sbr.rel (%p1386) target = $region64
        $region63: #{tpu_custom_call.1} parent=59 // pred_region
          %s1389 = sand.u32 %s121, 1
          %s1390 = scalar_lea.sflag [#allocation4], %s1389
          %s1391 = sand.u32 %s121, 1
          %s1392 = smul.addr %s1391, 2
          %s1393 = scalar_lea.vmem [#allocation10], %s1392
          %1394 = dma.done %s1390, 32
        $region64: #{tpu_custom_call.1} parent=59 // pred_fallthru
          _
      $region60: #{tpu_custom_call.1} parent=5 // pred_fallthru
        _
    $region6: #{tpu_custom_call.1} parent=1 // loop_footer
      %s22 = sadd.s32 1, %s18
    $region7: #{tpu_custom_call.1} parent=1 // loop_footer_branch
      %17 = sbr.rel target = $region3
    $region8: #{tpu_custom_call.1} parent=1 // loop_exit
      _
    %1395 = vsyncpa [#allocation3], 1
    %s1396 = scalar_lea.sflag [#allocation3], 1
    %1397 = vsyncpa %s1396, 1
    %1398 = vsyncpa [#allocation6], 1
    %1399 = vsyncpa [#allocation9], 1
    %1400 = vsyncpa [#allocation4], 1
    %s1401 = scalar_lea.sflag [#allocation4], 1
    %1402 = vsyncpa %s1401, 1

</llo_original>
